<compile_context>
chip_gen: v7x
topology: tpu7x:2x2x1
jax: 0.10.0
libtpu: 0.0.40
codegen_flags: <defaults>
</compile_context>

<pallas_src>
import jax
import jax.numpy as jnp
from jax.experimental import pallas as pl
from jax.experimental.pallas import tpu as pltpu
from jax.scipy.linalg import block_diag

EPSILON = 1e-6        # BatchNorm eps (the module passes eps=EPSILON explicitly)

# ---- problem sizes (small, consistent with the module) --------------------
B = 8                 # batch
D = 4                 # bsde.dim == dw_dim
H = 32                # hidden width (config.num_hiddens = [D, H, H, D])
N = 8                 # bsde.num_time_interval
NT = N - 1            # Euler steps taken by the reference loop
NG = NT - 1           # GradU networks whose output is actually used (= 6)
GD = NG * D           # 24  stacked input/output width
GH = NG * H           # 192 stacked hidden width
TOTAL_TIME = 1.0
DELTA_T = TOTAL_TIME / N

LAMBDA = 1.0
SIGMA = 2.0 ** 0.5

Y_INIT_RANGE = (0.0, 1.0)
Z_INIT_RANGE = (-0.1, 0.1)

# Rows of the packed small-parameter array (12, GH).
PR_G0, PR_BE0 = 0, 1
PR_B1, PR_G1, PR_BE1 = 2, 3, 4
PR_B2, PR_G2, PR_BE2 = 5, 6, 7
PR_B3, PR_G3, PR_BE3 = 8, 9, 10
PR_ZINIT = 11

# Single lane-dense (8, 128) output slab; every row holds the same means vector
# (the mean matmul uses an (8,B) ones/B matrix), the wrapper reads row 0:
#   lanes [0, NT)        per-step mean(y)       (after the full step update)
#   lanes [NT, 2NT)      per-step mean(f_increment)
#   lanes [2NT, 3NT)     per-step mean(z_increment)
#   lanes [3NT, 4NT)     per-step mean(x_t[:, 0])
#   lane  4NT            mean(xi) = mean(g_th(T, x_T))
#   lane  4NT+1          MSE(y_final, xi)
STATS_ROWS = 8
STATS_LANES = 128
L_Y, L_F, L_Z, L_X = 0, NT, 2 * NT, 3 * NT
L_XI, L_LOSS = 4 * NT, 4 * NT + 1
N_STAT_COLS = 4 * NT + 2


# ---------------------------------------------------------------------------
# Fused kernel: stacked GradU MLPs + Euler y-recursion + all means + MSE loss
# ---------------------------------------------------------------------------
def fused_forward_kernel(x_ref, dw_ref, pvec_ref, w1_ref, w2_ref, w3_ref,
                         yinit_ref, stats_ref):
    f32 = jnp.float32
    ones_row = jnp.full((1, B), 1.0 / B, f32)   # batch-mean weights (1/B folded)

    def bn(h, gamma, beta):
        # Training-mode BatchNorm1d: biased batch statistics, eps = EPSILON.
        # mean and E[h^2] fused into ONE (1,B)x(B,2C) MXU push (one round trip
        # instead of two serialized ones); variance clamped >= 0 before rsqrt.
        c = h.shape[1]
        mom = jnp.dot(ones_row, jnp.concatenate([h, h * h], axis=1),
                      preferred_element_type=f32)            # (1, 2C)
        mu = mom[:, :c]
        var = jnp.maximum(mom[:, c:] - mu * mu, 0.0)
        return gamma * (h - mu) * jax.lax.rsqrt(var + EPSILON) + beta

    # ---- packed 1-row parameters (static sub-views of one VMEM ref) --------
    g0  = pvec_ref[PR_G0:PR_G0 + 1, :GD]
    be0 = pvec_ref[PR_BE0:PR_BE0 + 1, :GD]
    b1  = pvec_ref[PR_B1:PR_B1 + 1, :]
    g1  = pvec_ref[PR_G1:PR_G1 + 1, :]
    be1 = pvec_ref[PR_BE1:PR_BE1 + 1, :]
    b2  = pvec_ref[PR_B2:PR_B2 + 1, :]
    g2  = pvec_ref[PR_G2:PR_G2 + 1, :]
    be2 = pvec_ref[PR_BE2:PR_BE2 + 1, :]
    b3  = pvec_ref[PR_B3:PR_B3 + 1, :GD]
    g3  = pvec_ref[PR_G3:PR_G3 + 1, :GD]      # already scaled by 1/D
    be3 = pvec_ref[PR_BE3:PR_BE3 + 1, :GD]    # already scaled by 1/D

    # ---- all NG GradU networks at once via block-diagonal weights ----------
    # Stacked input = x[:, :, 1..NG] which is a contiguous lane slice of the
    # time-major packed x.
    x_in = x_ref[:, D:D + GD]                                        # (B, GD)
    h = bn(x_in, g0, be0)
    h = jnp.dot(h, w1_ref[...], preferred_element_type=f32) + b1     # (B, GH)
    h = jnp.tanh(bn(h, g1, be1))
    h = jnp.dot(h, w2_ref[...], preferred_element_type=f32) + b2     # (B, GH)
    h = jnp.tanh(bn(h, g2, be2))
    h = jnp.dot(h, w3_ref[...], preferred_element_type=f32) + b3     # (B, GD)
    z_all = bn(h, g3, be3)                    # (B, GD); /dim folded into g3/be3

    # z used at Euler step t: t=0 -> broadcast z_init, t>=1 -> network t-1.
    z0 = jnp.broadcast_to(pvec_ref[PR_ZINIT:PR_ZINIT + 1, :D], (B, D))
    z_steps = jnp.concatenate([z0, z_all], axis=1)                   # (B, NT*D)

    # ---- cheap Euler y-recursion on the precomputed z columns --------------
    # No stores, no batch means inside the loop: columns are collected in
    # registers and reduced by one matmul afterwards.
    y = jnp.full((B, 1), yinit_ref[0, 0], f32)            # ones * y_init
    y_cols, f_cols, zi_cols, x_cols = [], [], [], []
    for t in range(NT):                                    # fully unrolled
        z_t = z_steps[:, t * D:(t + 1) * D]                # (B, D)
        dw_t = dw_ref[:, t * D:(t + 1) * D]                # (B, D)
        # f_increment = indicator * f_th(t, x, y, z); indicator == 1 everywhere.
        f_inc = -LAMBDA * jnp.sum(z_t * z_t, axis=1, keepdims=True)   # (B, 1)
        # dw_dim > 1 branch: sum(sigma_on_gradient * dw_t, dim=1, keepdim=True)
        z_inc = SIGMA * jnp.sum(z_t * dw_t, axis=1, keepdims=True)    # (B, 1)
        y = y - DELTA_T * f_inc + z_inc
        y_cols.append(y)
        f_cols.append(f_inc)
        zi_cols.append(z_inc)
        x_cols.append(x_ref[:, t * D:t * D + 1])           # x_t[:, 0]

    # Terminal condition and squared error column.
    x_last = x_ref[:, N * D:(N + 1) * D]                              # (B, D)
    xi = jnp.log(0.5 * (1.0 + jnp.sum(x_last * x_last, axis=1, keepdims=True)))
    sq = (y - xi) ** 2

    # ---- ALL batch means + MSE loss: one MXU push, one unmasked 128-lane store
    cols = jnp.concatenate(
        y_cols + f_cols + zi_cols + x_cols + [xi, sq]
        + [jnp.zeros((B, STATS_LANES - N_STAT_COLS), f32)], axis=1)   # (B, 128)
    mean_mat = jnp.full((STATS_ROWS, B), 1.0 / B, f32)                # 1/B folded
    stats_ref[...] = jnp.dot(mean_mat, cols, preferred_element_type=f32)


def run_forward_kernel(x_pk, dw_pk, pvec, w1, w2, w3, y11):
    vmem = pl.BlockSpec(memory_space=pltpu.MemorySpace.VMEM)
    smem = pl.BlockSpec(memory_space=pltpu.MemorySpace.SMEM)
    return pl.pallas_call(
        fused_forward_kernel,
        out_shape=jax.ShapeDtypeStruct((STATS_ROWS, STATS_LANES), jnp.float32),
        in_specs=[vmem,   # x packed (B, D*(N+1))
                  vmem,   # dw packed (B, D*N)
                  vmem,   # pvec (12, GH): all gammas/betas/biases + z_init
                  vmem,   # W1 block-diag (GD, GH)
                  vmem,   # W2 block-diag (GH, GH)
                  vmem,   # W3 block-diag (GH, GD)
                  smem],  # y_init (1, 1) scalar
        out_specs=vmem,   # single lane-dense (8, 128) stats slab
    )(x_pk, dw_pk, pvec, w1, w2, w3, y11)


# ---------------------------------------------------------------------------
# Parameter init (mirrors the module's per-network init distributions), then
# packing into the block-diagonal / lane-concatenated layout the kernel uses.
# The module builds NT networks; only the first NG = NT-1 are ever consumed
# (the reference loop discards the last network's output), so only those are
# packed.
# ---------------------------------------------------------------------------
def init_params(key):
    ks = jax.random.split(key, 6)
    std1 = 5.0 / (D + H) ** 0.5       # nn.init.normal_(weight, std=5/sqrt(cin+cout))
    std2 = 5.0 / (H + H) ** 0.5
    std3 = 5.0 / (H + D) ** 0.5
    f32 = jnp.float32
    raw = dict(
        w1=std1 * jax.random.normal(ks[0], (NT, D, H), f32),
        b1=jax.random.uniform(ks[1], (NT, H), f32, -1.0 / D ** 0.5, 1.0 / D ** 0.5),
        w2=std2 * jax.random.normal(ks[2], (NT, H, H), f32),
        b2=jax.random.uniform(ks[3], (NT, H), f32, -1.0 / H ** 0.5, 1.0 / H ** 0.5),
        w3=std3 * jax.random.normal(ks[4], (NT, H, D), f32),
        b3=jax.random.uniform(ks[5], (NT, D), f32, -1.0 / H ** 0.5, 1.0 / H ** 0.5),
        g0=jnp.ones((NT, D), f32), be0=jnp.zeros((NT, D), f32),
        g1=jnp.ones((NT, H), f32), be1=jnp.zeros((NT, H), f32),
        g2=jnp.ones((NT, H), f32), be2=jnp.zeros((NT, H), f32),
        g3=jnp.ones((NT, D), f32), be3=jnp.zeros((NT, D), f32),
    )
    return pack_params(raw)


def pack_params(raw):
    w1 = block_diag(*[raw["w1"][g] for g in range(NG)])    # (GD, GH)
    w2 = block_diag(*[raw["w2"][g] for g in range(NG)])    # (GH, GH)
    w3 = block_diag(*[raw["w3"][g] for g in range(NG)])    # (GH, GD)

    def row(name):                       # (NT, C) -> first NG nets, (1, NG*C)
        return raw[name][:NG].reshape(1, -1)

    def pad_row(r):                      # (1, w) -> (1, GH)
        return jnp.pad(r, ((0, 0), (0, GH - r.shape[1])))

    pvec = jnp.concatenate([
        pad_row(row("g0")), pad_row(row("be0")),
        row("b1"), row("g1"), row("be1"),
        row("b2"), row("g2"), row("be2"),
        pad_row(row("b3")),
        pad_row(row("g3") / float(D)),    # fold ForwardModel's net(x)/dim ...
        pad_row(row("be3") / float(D)),   # ... into BN3's affine parameters
    ], axis=0)                            # (11, GH); z_init row appended per call
    return {"w1": w1, "w2": w2, "w3": w3, "pvec": pvec}


# ---------------------------------------------------------------------------
# ForwardModel.forward equivalent
# ---------------------------------------------------------------------------
def forward_model(x, dw, params, y_init, z_init):
    # x: (B, D, N+1), dw: (B, D, N)  -- PyTorch NCW layout; pack time-major
    # along lanes so every per-step tensor is a static contiguous lane slice.
    x_pk = jnp.transpose(x, (0, 2, 1)).reshape(B, (N + 1) * D).astype(jnp.float32)
    dw_pk = jnp.transpose(dw, (0, 2, 1)).reshape(B, N * D).astype(jnp.float32)
    z_row = jnp.concatenate(
        [z_init.reshape(1, D).astype(jnp.float32),
         jnp.zeros((1, GH - D), jnp.float32)], axis=1)
    pvec = jnp.concatenate([params["pvec"], z_row], axis=0)     # (12, GH)
    y11 = y_init.reshape(1, 1).astype(jnp.float32)

    stats = run_forward_kernel(x_pk, dw_pk, pvec,
                               params["w1"], params["w2"], params["w3"], y11)
    row = stats[0]                                              # (128,)
    y_means = row[L_Y:L_Y + NT]
    f_means = row[L_F:L_F + NT]
    zinc_means = row[L_Z:L_Z + NT]
    x_means = row[L_X:L_X + NT]
    xi_mean = row[L_XI]
    loss = row[L_LOSS]

    # Metrics as stacked device arrays (same values the PyTorch lists would hold).
    m = {
        "f": f_means,                                           # (NT,)
        "f_dt": f_means * DELTA_T,                              # (NT,)
        "x": x_means,                                           # (NT,)
        "dw": jnp.zeros((0,), jnp.float32),                     # module leaves it empty
        "y": jnp.concatenate([jnp.mean(y_init)[None], y_means]),       # (NT+1,)
        "z": jnp.concatenate([jnp.mean(z_init)[None], zinc_means]),    # (NT+1,)
        "xi": xi_mean[None],                                    # (1,)
        "tau": jnp.zeros((NT,), jnp.float32),   # indicator == 1 => tau == 0, never breaks
    }
    return loss, y_init, m


if __name__ == "__main__":
    key = jax.random.PRNGKey(0)
    kx, kdw, kp, ky, kz = jax.random.split(key, 5)

    x = jax.random.normal(kx, (B, D, N + 1), jnp.float32)
    dw = (DELTA_T ** 0.5) * jax.random.normal(kdw, (B, D, N), jnp.float32)
    params = init_params(kp)
    y_init = jax.random.uniform(ky, (1,), jnp.float32, *Y_INIT_RANGE)
    z_init = jax.random.uniform(kz, (1, D), jnp.float32, *Z_INIT_RANGE)

    loss, y_init_out, m = jax.jit(forward_model)(x, dw, params, y_init, z_init)
    jax.block_until_ready(loss)
    jax.block_until_ready(m["y"])
    assert loss.shape == () and bool(jnp.isfinite(loss))
    print("KERNEL_OK")
</pallas_src>

<mosaic_0001>
module attributes {stable_mosaic.version = 11 : i64} {
  func.func @fused_forward_kernel(%arg0: memref<8x36xf32, #tpu.memory_space<vmem>>, %arg1: memref<8x32xf32, #tpu.memory_space<vmem>>, %arg2: memref<12x192xf32, #tpu.memory_space<vmem>>, %arg3: memref<24x192xf32, #tpu.memory_space<vmem>>, %arg4: memref<192x192xf32, #tpu.memory_space<vmem>>, %arg5: memref<192x24xf32, #tpu.memory_space<vmem>>, %arg6: memref<1x1xf32, #tpu.memory_space<smem>>, %arg7: memref<8x128xf32, #tpu.memory_space<vmem>>) attributes {dimension_semantics = [], scalar_prefetch = 0 : i64, scratch_operands = 0 : i64, tpu.core_type = #tpu.core_type<tc>} {
    %cst = arith.constant 1.250000e-01 : f32
    %0 = vector.broadcast %cst : f32 to vector<1x8xf32>
    %c0 = arith.constant 0 : index
    %c0_0 = arith.constant 0 : index
    %1 = vector.load %arg2[%c0, %c0_0] : memref<12x192xf32, #tpu.memory_space<vmem>>, vector<1x24xf32>
    %c1 = arith.constant 1 : index
    %c0_1 = arith.constant 0 : index
    %2 = vector.load %arg2[%c1, %c0_1] : memref<12x192xf32, #tpu.memory_space<vmem>>, vector<1x24xf32>
    %c2 = arith.constant 2 : index
    %c0_2 = arith.constant 0 : index
    %3 = vector.load %arg2[%c2, %c0_2] : memref<12x192xf32, #tpu.memory_space<vmem>>, vector<1x192xf32>
    %c3 = arith.constant 3 : index
    %c0_3 = arith.constant 0 : index
    %4 = vector.load %arg2[%c3, %c0_3] : memref<12x192xf32, #tpu.memory_space<vmem>>, vector<1x192xf32>
    %c4 = arith.constant 4 : index
    %c0_4 = arith.constant 0 : index
    %5 = vector.load %arg2[%c4, %c0_4] : memref<12x192xf32, #tpu.memory_space<vmem>>, vector<1x192xf32>
    %c5 = arith.constant 5 : index
    %c0_5 = arith.constant 0 : index
    %6 = vector.load %arg2[%c5, %c0_5] : memref<12x192xf32, #tpu.memory_space<vmem>>, vector<1x192xf32>
    %c6 = arith.constant 6 : index
    %c0_6 = arith.constant 0 : index
    %7 = vector.load %arg2[%c6, %c0_6] : memref<12x192xf32, #tpu.memory_space<vmem>>, vector<1x192xf32>
    %c7 = arith.constant 7 : index
    %c0_7 = arith.constant 0 : index
    %8 = vector.load %arg2[%c7, %c0_7] : memref<12x192xf32, #tpu.memory_space<vmem>>, vector<1x192xf32>
    %c8 = arith.constant 8 : index
    %c0_8 = arith.constant 0 : index
    %9 = vector.load %arg2[%c8, %c0_8] : memref<12x192xf32, #tpu.memory_space<vmem>>, vector<1x24xf32>
    %c9 = arith.constant 9 : index
    %c0_9 = arith.constant 0 : index
    %10 = vector.load %arg2[%c9, %c0_9] : memref<12x192xf32, #tpu.memory_space<vmem>>, vector<1x24xf32>
    %c10 = arith.constant 10 : index
    %c0_10 = arith.constant 0 : index
    %11 = vector.load %arg2[%c10, %c0_10] : memref<12x192xf32, #tpu.memory_space<vmem>>, vector<1x24xf32>
    %c0_11 = arith.constant 0 : index
    %c4_12 = arith.constant 4 : index
    %12 = vector.load %arg0[%c0_11, %c4_12] : memref<8x36xf32, #tpu.memory_space<vmem>>, vector<8x24xf32>
    %13 = arith.mulf %12, %12 : vector<8x24xf32>
    %14 = tpu.concatenate %12, %13 in 1 : vector<8x24xf32>, vector<8x24xf32> -> vector<8x48xf32>
    %cst_13 = arith.constant dense<0.000000e+00> : vector<1x48xf32>
    %15 = tpu.matmul %0, %14, %cst_13 {dimension_numbers = #tpu.dot_dimension_numbers<[1], [0], [0], [1], [0, 0, 1, 1], [], []>} : vector<1x8xf32>, vector<8x48xf32>, vector<1x48xf32> -> vector<1x48xf32>
    %16 = vector.extract_strided_slice %15 {offsets = [0, 0], sizes = [1, 24], strides = [1, 1]} : vector<1x48xf32> to vector<1x24xf32>
    %17 = vector.extract_strided_slice %15 {offsets = [0, 24], sizes = [1, 24], strides = [1, 1]} : vector<1x48xf32> to vector<1x24xf32>
    %18 = arith.mulf %16, %16 : vector<1x24xf32>
    %19 = arith.subf %17, %18 : vector<1x24xf32>
    %cst_14 = arith.constant 0.000000e+00 : f32
    %20 = vector.broadcast %cst_14 : f32 to vector<1x24xf32>
    %21 = arith.maximumf %19, %20 : vector<1x24xf32>
    %22 = vector.broadcast %16 : vector<1x24xf32> to vector<8x24xf32>
    %23 = arith.subf %12, %22 : vector<8x24xf32>
    %24 = vector.broadcast %1 : vector<1x24xf32> to vector<8x24xf32>
    %25 = arith.mulf %24, %23 : vector<8x24xf32>
    %cst_15 = arith.constant 9.99999997E-7 : f32
    %26 = vector.broadcast %cst_15 : f32 to vector<1x24xf32>
    %27 = arith.addf %21, %26 : vector<1x24xf32>
    %28 = math.rsqrt %27 : vector<1x24xf32>
    %29 = vector.broadcast %28 : vector<1x24xf32> to vector<8x24xf32>
    %30 = arith.mulf %25, %29 : vector<8x24xf32>
    %31 = vector.broadcast %2 : vector<1x24xf32> to vector<8x24xf32>
    %32 = arith.addf %30, %31 : vector<8x24xf32>
    %c0_16 = arith.constant 0 : index
    %c0_17 = arith.constant 0 : index
    %33 = vector.load %arg3[%c0_16, %c0_17] : memref<24x192xf32, #tpu.memory_space<vmem>>, vector<24x192xf32>
    %cst_18 = arith.constant dense<0.000000e+00> : vector<8x192xf32>
    %34 = tpu.matmul %32, %33, %cst_18 {dimension_numbers = #tpu.dot_dimension_numbers<[1], [0], [0], [1], [0, 0, 1, 1], [], []>} : vector<8x24xf32>, vector<24x192xf32>, vector<8x192xf32> -> vector<8x192xf32>
    %35 = vector.broadcast %3 : vector<1x192xf32> to vector<8x192xf32>
    %36 = arith.addf %34, %35 : vector<8x192xf32>
    %37 = arith.mulf %36, %36 : vector<8x192xf32>
    %38 = tpu.concatenate %36, %37 in 1 : vector<8x192xf32>, vector<8x192xf32> -> vector<8x384xf32>
    %cst_19 = arith.constant dense<0.000000e+00> : vector<1x384xf32>
    %39 = tpu.matmul %0, %38, %cst_19 {dimension_numbers = #tpu.dot_dimension_numbers<[1], [0], [0], [1], [0, 0, 1, 1], [], []>} : vector<1x8xf32>, vector<8x384xf32>, vector<1x384xf32> -> vector<1x384xf32>
    %40 = vector.extract_strided_slice %39 {offsets = [0, 0], sizes = [1, 192], strides = [1, 1]} : vector<1x384xf32> to vector<1x192xf32>
    %41 = vector.extract_strided_slice %39 {offsets = [0, 192], sizes = [1, 192], strides = [1, 1]} : vector<1x384xf32> to vector<1x192xf32>
    %42 = arith.mulf %40, %40 : vector<1x192xf32>
    %43 = arith.subf %41, %42 : vector<1x192xf32>
    %cst_20 = arith.constant 0.000000e+00 : f32
    %44 = vector.broadcast %cst_20 : f32 to vector<1x192xf32>
    %45 = arith.maximumf %43, %44 : vector<1x192xf32>
    %46 = vector.broadcast %40 : vector<1x192xf32> to vector<8x192xf32>
    %47 = arith.subf %36, %46 : vector<8x192xf32>
    %48 = vector.broadcast %4 : vector<1x192xf32> to vector<8x192xf32>
    %49 = arith.mulf %48, %47 : vector<8x192xf32>
    %cst_21 = arith.constant 9.99999997E-7 : f32
    %50 = vector.broadcast %cst_21 : f32 to vector<1x192xf32>
    %51 = arith.addf %45, %50 : vector<1x192xf32>
    %52 = math.rsqrt %51 : vector<1x192xf32>
    %53 = vector.broadcast %52 : vector<1x192xf32> to vector<8x192xf32>
    %54 = arith.mulf %49, %53 : vector<8x192xf32>
    %55 = vector.broadcast %5 : vector<1x192xf32> to vector<8x192xf32>
    %56 = arith.addf %54, %55 : vector<8x192xf32>
    %57 = math.tanh %56 : vector<8x192xf32>
    %c0_22 = arith.constant 0 : index
    %c0_23 = arith.constant 0 : index
    %58 = vector.load %arg4[%c0_22, %c0_23] : memref<192x192xf32, #tpu.memory_space<vmem>>, vector<192x192xf32>
    %cst_24 = arith.constant dense<0.000000e+00> : vector<8x192xf32>
    %59 = tpu.matmul %57, %58, %cst_24 {dimension_numbers = #tpu.dot_dimension_numbers<[1], [0], [0], [1], [0, 0, 1, 1], [], []>} : vector<8x192xf32>, vector<192x192xf32>, vector<8x192xf32> -> vector<8x192xf32>
    %60 = vector.broadcast %6 : vector<1x192xf32> to vector<8x192xf32>
    %61 = arith.addf %59, %60 : vector<8x192xf32>
    %62 = arith.mulf %61, %61 : vector<8x192xf32>
    %63 = tpu.concatenate %61, %62 in 1 : vector<8x192xf32>, vector<8x192xf32> -> vector<8x384xf32>
    %cst_25 = arith.constant dense<0.000000e+00> : vector<1x384xf32>
    %64 = tpu.matmul %0, %63, %cst_25 {dimension_numbers = #tpu.dot_dimension_numbers<[1], [0], [0], [1], [0, 0, 1, 1], [], []>} : vector<1x8xf32>, vector<8x384xf32>, vector<1x384xf32> -> vector<1x384xf32>
    %65 = vector.extract_strided_slice %64 {offsets = [0, 0], sizes = [1, 192], strides = [1, 1]} : vector<1x384xf32> to vector<1x192xf32>
    %66 = vector.extract_strided_slice %64 {offsets = [0, 192], sizes = [1, 192], strides = [1, 1]} : vector<1x384xf32> to vector<1x192xf32>
    %67 = arith.mulf %65, %65 : vector<1x192xf32>
    %68 = arith.subf %66, %67 : vector<1x192xf32>
    %cst_26 = arith.constant 0.000000e+00 : f32
    %69 = vector.broadcast %cst_26 : f32 to vector<1x192xf32>
    %70 = arith.maximumf %68, %69 : vector<1x192xf32>
    %71 = vector.broadcast %65 : vector<1x192xf32> to vector<8x192xf32>
    %72 = arith.subf %61, %71 : vector<8x192xf32>
    %73 = vector.broadcast %7 : vector<1x192xf32> to vector<8x192xf32>
    %74 = arith.mulf %73, %72 : vector<8x192xf32>
    %cst_27 = arith.constant 9.99999997E-7 : f32
    %75 = vector.broadcast %cst_27 : f32 to vector<1x192xf32>
    %76 = arith.addf %70, %75 : vector<1x192xf32>
    %77 = math.rsqrt %76 : vector<1x192xf32>
    %78 = vector.broadcast %77 : vector<1x192xf32> to vector<8x192xf32>
    %79 = arith.mulf %74, %78 : vector<8x192xf32>
    %80 = vector.broadcast %8 : vector<1x192xf32> to vector<8x192xf32>
    %81 = arith.addf %79, %80 : vector<8x192xf32>
    %82 = math.tanh %81 : vector<8x192xf32>
    %c0_28 = arith.constant 0 : index
    %c0_29 = arith.constant 0 : index
    %83 = vector.load %arg5[%c0_28, %c0_29] : memref<192x24xf32, #tpu.memory_space<vmem>>, vector<192x24xf32>
    %cst_30 = arith.constant dense<0.000000e+00> : vector<8x24xf32>
    %84 = tpu.matmul %82, %83, %cst_30 {dimension_numbers = #tpu.dot_dimension_numbers<[1], [0], [0], [1], [0, 0, 1, 1], [], []>} : vector<8x192xf32>, vector<192x24xf32>, vector<8x24xf32> -> vector<8x24xf32>
    %85 = vector.broadcast %9 : vector<1x24xf32> to vector<8x24xf32>
    %86 = arith.addf %84, %85 : vector<8x24xf32>
    %87 = arith.mulf %86, %86 : vector<8x24xf32>
    %88 = tpu.concatenate %86, %87 in 1 : vector<8x24xf32>, vector<8x24xf32> -> vector<8x48xf32>
    %cst_31 = arith.constant dense<0.000000e+00> : vector<1x48xf32>
    %89 = tpu.matmul %0, %88, %cst_31 {dimension_numbers = #tpu.dot_dimension_numbers<[1], [0], [0], [1], [0, 0, 1, 1], [], []>} : vector<1x8xf32>, vector<8x48xf32>, vector<1x48xf32> -> vector<1x48xf32>
    %90 = vector.extract_strided_slice %89 {offsets = [0, 0], sizes = [1, 24], strides = [1, 1]} : vector<1x48xf32> to vector<1x24xf32>
    %91 = vector.extract_strided_slice %89 {offsets = [0, 24], sizes = [1, 24], strides = [1, 1]} : vector<1x48xf32> to vector<1x24xf32>
    %92 = arith.mulf %90, %90 : vector<1x24xf32>
    %93 = arith.subf %91, %92 : vector<1x24xf32>
    %cst_32 = arith.constant 0.000000e+00 : f32
    %94 = vector.broadcast %cst_32 : f32 to vector<1x24xf32>
    %95 = arith.maximumf %93, %94 : vector<1x24xf32>
    %96 = vector.broadcast %90 : vector<1x24xf32> to vector<8x24xf32>
    %97 = arith.subf %86, %96 : vector<8x24xf32>
    %98 = vector.broadcast %10 : vector<1x24xf32> to vector<8x24xf32>
    %99 = arith.mulf %98, %97 : vector<8x24xf32>
    %cst_33 = arith.constant 9.99999997E-7 : f32
    %100 = vector.broadcast %cst_33 : f32 to vector<1x24xf32>
    %101 = arith.addf %95, %100 : vector<1x24xf32>
    %102 = math.rsqrt %101 : vector<1x24xf32>
    %103 = vector.broadcast %102 : vector<1x24xf32> to vector<8x24xf32>
    %104 = arith.mulf %99, %103 : vector<8x24xf32>
    %105 = vector.broadcast %11 : vector<1x24xf32> to vector<8x24xf32>
    %106 = arith.addf %104, %105 : vector<8x24xf32>
    %c11 = arith.constant 11 : index
    %c0_34 = arith.constant 0 : index
    %107 = vector.load %arg2[%c11, %c0_34] : memref<12x192xf32, #tpu.memory_space<vmem>>, vector<1x4xf32>
    %108 = vector.shape_cast %107 : vector<1x4xf32> to vector<1x4xf32>
    %109 = vector.broadcast %108 : vector<1x4xf32> to vector<8x4xf32>
    %110 = tpu.concatenate %109, %106 in 1 : vector<8x4xf32>, vector<8x24xf32> -> vector<8x28xf32>
    %c0_35 = arith.constant 0 : index
    %c0_36 = arith.constant 0 : index
    %111 = memref.load %arg6[%c0_35, %c0_36] : memref<1x1xf32, #tpu.memory_space<smem>>
    %112 = vector.broadcast %111 : f32 to vector<8x1xf32>
    %113 = vector.extract_strided_slice %110 {offsets = [0, 0], sizes = [8, 4], strides = [1, 1]} : vector<8x28xf32> to vector<8x4xf32>
    %c0_37 = arith.constant 0 : index
    %c0_38 = arith.constant 0 : index
    %114 = vector.load %arg1[%c0_37, %c0_38] : memref<8x32xf32, #tpu.memory_space<vmem>>, vector<8x4xf32>
    %115 = arith.mulf %113, %113 : vector<8x4xf32>
    %cst_39 = arith.constant dense<0.000000e+00> : vector<8xf32>
    %116 = vector.multi_reduction <add>, %115, %cst_39 [1] : vector<8x4xf32> to vector<8xf32>
    %117 = vector.shape_cast %116 : vector<8xf32> to vector<8x1xf32>
    %cst_40 = arith.constant -1.000000e+00 : f32
    %118 = vector.broadcast %cst_40 : f32 to vector<8x1xf32>
    %119 = arith.mulf %118, %117 : vector<8x1xf32>
    %120 = arith.mulf %113, %114 : vector<8x4xf32>
    %cst_41 = arith.constant dense<0.000000e+00> : vector<8xf32>
    %121 = vector.multi_reduction <add>, %120, %cst_41 [1] : vector<8x4xf32> to vector<8xf32>
    %122 = vector.shape_cast %121 : vector<8xf32> to vector<8x1xf32>
    %cst_42 = arith.constant 1.41421354 : f32
    %123 = vector.broadcast %cst_42 : f32 to vector<8x1xf32>
    %124 = arith.mulf %123, %122 : vector<8x1xf32>
    %cst_43 = arith.constant 1.250000e-01 : f32
    %125 = vector.broadcast %cst_43 : f32 to vector<8x1xf32>
    %126 = arith.mulf %125, %119 : vector<8x1xf32>
    %127 = arith.subf %112, %126 : vector<8x1xf32>
    %128 = arith.addf %127, %124 : vector<8x1xf32>
    %c0_44 = arith.constant 0 : index
    %c0_45 = arith.constant 0 : index
    %129 = vector.load %arg0[%c0_44, %c0_45] : memref<8x36xf32, #tpu.memory_space<vmem>>, vector<8x1xf32>
    %130 = vector.extract_strided_slice %110 {offsets = [0, 4], sizes = [8, 4], strides = [1, 1]} : vector<8x28xf32> to vector<8x4xf32>
    %c0_46 = arith.constant 0 : index
    %c4_47 = arith.constant 4 : index
    %131 = vector.load %arg1[%c0_46, %c4_47] : memref<8x32xf32, #tpu.memory_space<vmem>>, vector<8x4xf32>
    %132 = arith.mulf %130, %130 : vector<8x4xf32>
    %cst_48 = arith.constant dense<0.000000e+00> : vector<8xf32>
    %133 = vector.multi_reduction <add>, %132, %cst_48 [1] : vector<8x4xf32> to vector<8xf32>
    %134 = vector.shape_cast %133 : vector<8xf32> to vector<8x1xf32>
    %cst_49 = arith.constant -1.000000e+00 : f32
    %135 = vector.broadcast %cst_49 : f32 to vector<8x1xf32>
    %136 = arith.mulf %135, %134 : vector<8x1xf32>
    %137 = arith.mulf %130, %131 : vector<8x4xf32>
    %cst_50 = arith.constant dense<0.000000e+00> : vector<8xf32>
    %138 = vector.multi_reduction <add>, %137, %cst_50 [1] : vector<8x4xf32> to vector<8xf32>
    %139 = vector.shape_cast %138 : vector<8xf32> to vector<8x1xf32>
    %cst_51 = arith.constant 1.41421354 : f32
    %140 = vector.broadcast %cst_51 : f32 to vector<8x1xf32>
    %141 = arith.mulf %140, %139 : vector<8x1xf32>
    %cst_52 = arith.constant 1.250000e-01 : f32
    %142 = vector.broadcast %cst_52 : f32 to vector<8x1xf32>
    %143 = arith.mulf %142, %136 : vector<8x1xf32>
    %144 = arith.subf %128, %143 : vector<8x1xf32>
    %145 = arith.addf %144, %141 : vector<8x1xf32>
    %c0_53 = arith.constant 0 : index
    %c4_54 = arith.constant 4 : index
    %146 = vector.load %arg0[%c0_53, %c4_54] : memref<8x36xf32, #tpu.memory_space<vmem>>, vector<8x1xf32>
    %147 = vector.extract_strided_slice %110 {offsets = [0, 8], sizes = [8, 4], strides = [1, 1]} : vector<8x28xf32> to vector<8x4xf32>
    %c0_55 = arith.constant 0 : index
    %c8_56 = arith.constant 8 : index
    %148 = vector.load %arg1[%c0_55, %c8_56] : memref<8x32xf32, #tpu.memory_space<vmem>>, vector<8x4xf32>
    %149 = arith.mulf %147, %147 : vector<8x4xf32>
    %cst_57 = arith.constant dense<0.000000e+00> : vector<8xf32>
    %150 = vector.multi_reduction <add>, %149, %cst_57 [1] : vector<8x4xf32> to vector<8xf32>
    %151 = vector.shape_cast %150 : vector<8xf32> to vector<8x1xf32>
    %cst_58 = arith.constant -1.000000e+00 : f32
    %152 = vector.broadcast %cst_58 : f32 to vector<8x1xf32>
    %153 = arith.mulf %152, %151 : vector<8x1xf32>
    %154 = arith.mulf %147, %148 : vector<8x4xf32>
    %cst_59 = arith.constant dense<0.000000e+00> : vector<8xf32>
    %155 = vector.multi_reduction <add>, %154, %cst_59 [1] : vector<8x4xf32> to vector<8xf32>
    %156 = vector.shape_cast %155 : vector<8xf32> to vector<8x1xf32>
    %cst_60 = arith.constant 1.41421354 : f32
    %157 = vector.broadcast %cst_60 : f32 to vector<8x1xf32>
    %158 = arith.mulf %157, %156 : vector<8x1xf32>
    %cst_61 = arith.constant 1.250000e-01 : f32
    %159 = vector.broadcast %cst_61 : f32 to vector<8x1xf32>
    %160 = arith.mulf %159, %153 : vector<8x1xf32>
    %161 = arith.subf %145, %160 : vector<8x1xf32>
    %162 = arith.addf %161, %158 : vector<8x1xf32>
    %c0_62 = arith.constant 0 : index
    %c8_63 = arith.constant 8 : index
    %163 = vector.load %arg0[%c0_62, %c8_63] : memref<8x36xf32, #tpu.memory_space<vmem>>, vector<8x1xf32>
    %164 = vector.extract_strided_slice %110 {offsets = [0, 12], sizes = [8, 4], strides = [1, 1]} : vector<8x28xf32> to vector<8x4xf32>
    %c0_64 = arith.constant 0 : index
    %c12 = arith.constant 12 : index
    %165 = vector.load %arg1[%c0_64, %c12] : memref<8x32xf32, #tpu.memory_space<vmem>>, vector<8x4xf32>
    %166 = arith.mulf %164, %164 : vector<8x4xf32>
    %cst_65 = arith.constant dense<0.000000e+00> : vector<8xf32>
    %167 = vector.multi_reduction <add>, %166, %cst_65 [1] : vector<8x4xf32> to vector<8xf32>
    %168 = vector.shape_cast %167 : vector<8xf32> to vector<8x1xf32>
    %cst_66 = arith.constant -1.000000e+00 : f32
    %169 = vector.broadcast %cst_66 : f32 to vector<8x1xf32>
    %170 = arith.mulf %169, %168 : vector<8x1xf32>
    %171 = arith.mulf %164, %165 : vector<8x4xf32>
    %cst_67 = arith.constant dense<0.000000e+00> : vector<8xf32>
    %172 = vector.multi_reduction <add>, %171, %cst_67 [1] : vector<8x4xf32> to vector<8xf32>
    %173 = vector.shape_cast %172 : vector<8xf32> to vector<8x1xf32>
    %cst_68 = arith.constant 1.41421354 : f32
    %174 = vector.broadcast %cst_68 : f32 to vector<8x1xf32>
    %175 = arith.mulf %174, %173 : vector<8x1xf32>
    %cst_69 = arith.constant 1.250000e-01 : f32
    %176 = vector.broadcast %cst_69 : f32 to vector<8x1xf32>
    %177 = arith.mulf %176, %170 : vector<8x1xf32>
    %178 = arith.subf %162, %177 : vector<8x1xf32>
    %179 = arith.addf %178, %175 : vector<8x1xf32>
    %c0_70 = arith.constant 0 : index
    %c12_71 = arith.constant 12 : index
    %180 = vector.load %arg0[%c0_70, %c12_71] : memref<8x36xf32, #tpu.memory_space<vmem>>, vector<8x1xf32>
    %181 = vector.extract_strided_slice %110 {offsets = [0, 16], sizes = [8, 4], strides = [1, 1]} : vector<8x28xf32> to vector<8x4xf32>
    %c0_72 = arith.constant 0 : index
    %c16 = arith.constant 16 : index
    %182 = vector.load %arg1[%c0_72, %c16] : memref<8x32xf32, #tpu.memory_space<vmem>>, vector<8x4xf32>
    %183 = arith.mulf %181, %181 : vector<8x4xf32>
    %cst_73 = arith.constant dense<0.000000e+00> : vector<8xf32>
    %184 = vector.multi_reduction <add>, %183, %cst_73 [1] : vector<8x4xf32> to vector<8xf32>
    %185 = vector.shape_cast %184 : vector<8xf32> to vector<8x1xf32>
    %cst_74 = arith.constant -1.000000e+00 : f32
    %186 = vector.broadcast %cst_74 : f32 to vector<8x1xf32>
    %187 = arith.mulf %186, %185 : vector<8x1xf32>
    %188 = arith.mulf %181, %182 : vector<8x4xf32>
    %cst_75 = arith.constant dense<0.000000e+00> : vector<8xf32>
    %189 = vector.multi_reduction <add>, %188, %cst_75 [1] : vector<8x4xf32> to vector<8xf32>
    %190 = vector.shape_cast %189 : vector<8xf32> to vector<8x1xf32>
    %cst_76 = arith.constant 1.41421354 : f32
    %191 = vector.broadcast %cst_76 : f32 to vector<8x1xf32>
    %192 = arith.mulf %191, %190 : vector<8x1xf32>
    %cst_77 = arith.constant 1.250000e-01 : f32
    %193 = vector.broadcast %cst_77 : f32 to vector<8x1xf32>
    %194 = arith.mulf %193, %187 : vector<8x1xf32>
    %195 = arith.subf %179, %194 : vector<8x1xf32>
    %196 = arith.addf %195, %192 : vector<8x1xf32>
    %c0_78 = arith.constant 0 : index
    %c16_79 = arith.constant 16 : index
    %197 = vector.load %arg0[%c0_78, %c16_79] : memref<8x36xf32, #tpu.memory_space<vmem>>, vector<8x1xf32>
    %198 = vector.extract_strided_slice %110 {offsets = [0, 20], sizes = [8, 4], strides = [1, 1]} : vector<8x28xf32> to vector<8x4xf32>
    %c0_80 = arith.constant 0 : index
    %c20 = arith.constant 20 : index
    %199 = vector.load %arg1[%c0_80, %c20] : memref<8x32xf32, #tpu.memory_space<vmem>>, vector<8x4xf32>
    %200 = arith.mulf %198, %198 : vector<8x4xf32>
    %cst_81 = arith.constant dense<0.000000e+00> : vector<8xf32>
    %201 = vector.multi_reduction <add>, %200, %cst_81 [1] : vector<8x4xf32> to vector<8xf32>
    %202 = vector.shape_cast %201 : vector<8xf32> to vector<8x1xf32>
    %cst_82 = arith.constant -1.000000e+00 : f32
    %203 = vector.broadcast %cst_82 : f32 to vector<8x1xf32>
    %204 = arith.mulf %203, %202 : vector<8x1xf32>
    %205 = arith.mulf %198, %199 : vector<8x4xf32>
    %cst_83 = arith.constant dense<0.000000e+00> : vector<8xf32>
    %206 = vector.multi_reduction <add>, %205, %cst_83 [1] : vector<8x4xf32> to vector<8xf32>
    %207 = vector.shape_cast %206 : vector<8xf32> to vector<8x1xf32>
    %cst_84 = arith.constant 1.41421354 : f32
    %208 = vector.broadcast %cst_84 : f32 to vector<8x1xf32>
    %209 = arith.mulf %208, %207 : vector<8x1xf32>
    %cst_85 = arith.constant 1.250000e-01 : f32
    %210 = vector.broadcast %cst_85 : f32 to vector<8x1xf32>
    %211 = arith.mulf %210, %204 : vector<8x1xf32>
    %212 = arith.subf %196, %211 : vector<8x1xf32>
    %213 = arith.addf %212, %209 : vector<8x1xf32>
    %c0_86 = arith.constant 0 : index
    %c20_87 = arith.constant 20 : index
    %214 = vector.load %arg0[%c0_86, %c20_87] : memref<8x36xf32, #tpu.memory_space<vmem>>, vector<8x1xf32>
    %215 = vector.extract_strided_slice %110 {offsets = [0, 24], sizes = [8, 4], strides = [1, 1]} : vector<8x28xf32> to vector<8x4xf32>
    %c0_88 = arith.constant 0 : index
    %c24 = arith.constant 24 : index
    %216 = vector.load %arg1[%c0_88, %c24] : memref<8x32xf32, #tpu.memory_space<vmem>>, vector<8x4xf32>
    %217 = arith.mulf %215, %215 : vector<8x4xf32>
    %cst_89 = arith.constant dense<0.000000e+00> : vector<8xf32>
    %218 = vector.multi_reduction <add>, %217, %cst_89 [1] : vector<8x4xf32> to vector<8xf32>
    %219 = vector.shape_cast %218 : vector<8xf32> to vector<8x1xf32>
    %cst_90 = arith.constant -1.000000e+00 : f32
    %220 = vector.broadcast %cst_90 : f32 to vector<8x1xf32>
    %221 = arith.mulf %220, %219 : vector<8x1xf32>
    %222 = arith.mulf %215, %216 : vector<8x4xf32>
    %cst_91 = arith.constant dense<0.000000e+00> : vector<8xf32>
    %223 = vector.multi_reduction <add>, %222, %cst_91 [1] : vector<8x4xf32> to vector<8xf32>
    %224 = vector.shape_cast %223 : vector<8xf32> to vector<8x1xf32>
    %cst_92 = arith.constant 1.41421354 : f32
    %225 = vector.broadcast %cst_92 : f32 to vector<8x1xf32>
    %226 = arith.mulf %225, %224 : vector<8x1xf32>
    %cst_93 = arith.constant 1.250000e-01 : f32
    %227 = vector.broadcast %cst_93 : f32 to vector<8x1xf32>
    %228 = arith.mulf %227, %221 : vector<8x1xf32>
    %229 = arith.subf %213, %228 : vector<8x1xf32>
    %230 = arith.addf %229, %226 : vector<8x1xf32>
    %c0_94 = arith.constant 0 : index
    %c24_95 = arith.constant 24 : index
    %231 = vector.load %arg0[%c0_94, %c24_95] : memref<8x36xf32, #tpu.memory_space<vmem>>, vector<8x1xf32>
    %c0_96 = arith.constant 0 : index
    %c32 = arith.constant 32 : index
    %232 = vector.load %arg0[%c0_96, %c32] : memref<8x36xf32, #tpu.memory_space<vmem>>, vector<8x4xf32>
    %233 = arith.mulf %232, %232 : vector<8x4xf32>
    %cst_97 = arith.constant dense<0.000000e+00> : vector<8xf32>
    %234 = vector.multi_reduction <add>, %233, %cst_97 [1] : vector<8x4xf32> to vector<8xf32>
    %235 = vector.shape_cast %234 : vector<8xf32> to vector<8x1xf32>
    %cst_98 = arith.constant 1.000000e+00 : f32
    %236 = vector.broadcast %cst_98 : f32 to vector<8x1xf32>
    %237 = arith.addf %236, %235 : vector<8x1xf32>
    %cst_99 = arith.constant 5.000000e-01 : f32
    %238 = vector.broadcast %cst_99 : f32 to vector<8x1xf32>
    %239 = arith.mulf %238, %237 : vector<8x1xf32>
    %240 = math.log %239 : vector<8x1xf32>
    %241 = arith.subf %230, %240 : vector<8x1xf32>
    %242 = arith.mulf %241, %241 : vector<8x1xf32>
    %cst_100 = arith.constant 0.000000e+00 : f32
    %243 = vector.broadcast %cst_100 : f32 to vector<8x98xf32>
    %244 = tpu.concatenate %128, %145, %162, %179, %196, %213, %230, %119, %136, %153, %170, %187, %204, %221, %124, %141 in 1 : vector<8x1xf32>, vector<8x1xf32>, vector<8x1xf32>, vector<8x1xf32>, vector<8x1xf32>, vector<8x1xf32>, vector<8x1xf32>, vector<8x1xf32>, vector<8x1xf32>, vector<8x1xf32>, vector<8x1xf32>, vector<8x1xf32>, vector<8x1xf32>, vector<8x1xf32>, vector<8x1xf32>, vector<8x1xf32> -> vector<8x16xf32>
    %245 = tpu.concatenate %158, %175, %192, %209, %226, %129, %146, %163, %180, %197, %214, %231, %240, %242, %243 in 1 : vector<8x1xf32>, vector<8x1xf32>, vector<8x1xf32>, vector<8x1xf32>, vector<8x1xf32>, vector<8x1xf32>, vector<8x1xf32>, vector<8x1xf32>, vector<8x1xf32>, vector<8x1xf32>, vector<8x1xf32>, vector<8x1xf32>, vector<8x1xf32>, vector<8x1xf32>, vector<8x98xf32> -> vector<8x112xf32>
    %246 = tpu.concatenate %244, %245 in 1 : vector<8x16xf32>, vector<8x112xf32> -> vector<8x128xf32>
    %cst_101 = arith.constant 1.250000e-01 : f32
    %247 = vector.broadcast %cst_101 : f32 to vector<8x8xf32>
    %cst_102 = arith.constant dense<0.000000e+00> : vector<8x128xf32>
    %248 = tpu.matmul %247, %246, %cst_102 {dimension_numbers = #tpu.dot_dimension_numbers<[1], [0], [0], [1], [0, 0, 1, 1], [], []>} : vector<8x8xf32>, vector<8x128xf32>, vector<8x128xf32> -> vector<8x128xf32>
    %c0_103 = arith.constant 0 : index
    %c0_104 = arith.constant 0 : index
    %249 = vector.load %arg7[%c0_103, %c0_104] : memref<8x128xf32, #tpu.memory_space<vmem>>, vector<8x128xf32>
    tpu.vector_store %arg7[%c0_103, %c0_104], %248 {strides = array<i32>} : memref<8x128xf32, #tpu.memory_space<vmem>>, vector<8x128xf32>,
    return
  }
}

</mosaic_0001>

<llo_original>
// kernel: forward_model.1
$region0: #{forward_model.1}
  #allocation0 [shape = 'u32[]', space=smem, size = 0x4, offset = 0x4, fixed_abs, tag = 'smem constant byte address 0x4 - core index']
  #allocation1 [shape = 'u32[144,128]{1,0:T(1,128)}', space=vmem, size = 0x12000, scoped, tag = 'internal scratch']
  #allocation2 [shape = 'f32[1,1]{1,0:T(1,128)S(6)}', space=smem, size = 0x200, scoped, tag = 'scoped memory for forward_model.1']
  %s0 = inlined_call_operand.vmem [shape: f32[8,36], index: 0, kind: input, shape index: {}]
  %s1 = inlined_call_operand.vmem [shape: f32[8,32], index: 1, kind: input, shape index: {}]
  %s2 = inlined_call_operand.vmem [shape: f32[12,192], index: 2, kind: input, shape index: {}]
  %s3 = inlined_call_operand.vmem [shape: f32[24,192], index: 3, kind: input, shape index: {}]
  %s4 = inlined_call_operand.vmem [shape: f32[192,192], index: 4, kind: input, shape index: {}]
  %s5 = inlined_call_operand.vmem [shape: f32[192,24], index: 5, kind: input, shape index: {}]
  %s6 = inlined_call_operand.<no memory space> [shape: f32[1,1], index: 6, kind: input, shape index: {}]
  %s7 = inlined_call_operand.vmem [shape: f32[8,128], index: 7, kind: output, shape index: {}]
  %s8 = sld [smem:[#allocation0]]
  $region38: #{forward_model.1} parent=0
    _
  %s10 = ssub.s32 1, %s8
  %s11 = scalar_select 0, %s10, %s8
  %12 = sst [smem:[#allocation2]] %s6
  // Predicated region
  $region2: #{forward_model.1} parent=0 // pred_check
    _
  $region3: #{forward_model.1} parent=0 // pred_check_branch
    %14 = sbr.rel (0) target = $region5
  $region4: #{forward_model.1} parent=0 // pred_region
    _
  $region5: #{forward_model.1} parent=0 // pred_fallthru
    _
  // Predicated region
  $region6: #{forward_model.1} parent=0 // pred_check
    _
  $region7: #{forward_model.1} parent=0 // pred_check_branch
    %16 = sbr.rel (0) target = $region9
  $region8: #{forward_model.1} parent=0 // pred_region
    _
  $region9: #{forward_model.1} parent=0 // pred_fallthru
    _
  // Predicated region
  $region10: #{forward_model.1} parent=0 // pred_check
    _
  $region11: #{forward_model.1} parent=0 // pred_check_branch
    %18 = sbr.rel (0) target = $region13
  $region12: #{forward_model.1} parent=0 // pred_region
    _
  $region13: #{forward_model.1} parent=0 // pred_fallthru
    _
  // Predicated region
  $region14: #{forward_model.1} parent=0 // pred_check
    _
  $region15: #{forward_model.1} parent=0 // pred_check_branch
    %20 = sbr.rel (0) target = $region17
  $region16: #{forward_model.1} parent=0 // pred_region
    _
  $region17: #{forward_model.1} parent=0 // pred_fallthru
    _
  // Predicated region
  $region18: #{forward_model.1} parent=0 // pred_check
    _
  $region19: #{forward_model.1} parent=0 // pred_check_branch
    %22 = sbr.rel (0) target = $region21
  $region20: #{forward_model.1} parent=0 // pred_region
    _
  $region21: #{forward_model.1} parent=0 // pred_fallthru
    _
  // Predicated region
  $region22: #{forward_model.1} parent=0 // pred_check
    _
  $region23: #{forward_model.1} parent=0 // pred_check_branch
    %24 = sbr.rel (0) target = $region25
  $region24: #{forward_model.1} parent=0 // pred_region
    _
  $region25: #{forward_model.1} parent=0 // pred_fallthru
    _
  // Predicated region
  $region26: #{forward_model.1} parent=0 // pred_check
    _
  $region27: #{forward_model.1} parent=0 // pred_check_branch
    %26 = sbr.rel (0) target = $region29
  $region28: #{forward_model.1} parent=0 // pred_region
    _
  $region29: #{forward_model.1} parent=0 // pred_fallthru
    _
  %v27 = vld [vmem:[%s2] ss:$0 sm:$0xff]
  %v28 = vld [vmem:[%s2 + $0x1] ss:$0 sm:$0xff]
  %s29 = scalar_lea.vmem %s2, 2
  %v30 = vld [vmem:[%s29] ss:$8 sm:$0x3]
  %s31 = scalar_lea.vmem %s2, 3
  %v32 = vld [vmem:[%s31] ss:$8 sm:$0x3]
  %s33 = scalar_lea.vmem %s2, 4
  %v34 = vld [vmem:[%s33] ss:$8 sm:$0x3]
  %s35 = scalar_lea.vmem %s2, 5
  %v36 = vld [vmem:[%s35] ss:$8 sm:$0x3]
  %s37 = scalar_lea.vmem %s2, 6
  %v38 = vld [vmem:[%s37] ss:$8 sm:$0x3]
  %s39 = scalar_lea.vmem %s2, 7
  %v40 = vld [vmem:[%s39] ss:$8 sm:$0x3]
  %v41 = vld [vmem:[%s2 + $0x10] ss:$0 sm:$0xff]
  %v42 = vld [vmem:[%s2 + $0x11] ss:$0 sm:$0xff]
  %v43 = vld [vmem:[%s2 + $0x12] ss:$0 sm:$0xff]
  %v44 = vld [vmem:[%s0] sm:$0xff]
  %v45 = vmul.f32 %v44, %v44
  %47 = vrot.lane.b32.xlu0 %v44, 124
  %v48 = vpop.permute.xlu0 %47
  %51 = vrot.lane.b32.xlu0 %v45, 20
  %v52 = vpop.permute.xlu0 %51
  %vm54 = vcmask 195584
  %v55 = vsel %vm54, %v48, %v52
  %vm56 = vcmask 64512
  %v58 = vsel %vm56, 0.125, 0
  %60 = vmatprep.subr.mxu0 0.0
  %61 = vmatpush1.msra.mxu0 %v55
  %62 = vmatprep.subr.mxu0 0.0
  %63 = vmatpush1.msra.mxu0 0.0
  %64 = vmatprep.subr.mxu0 0.0
  %65 = vmatpush1.msra.mxu0 0.0
  %66 = vmatprep.subr.mxu0 0.0
  %67 = vmatpush1.msra.mxu0 0.0
  %68 = vmatprep.subr.mxu0 0.0
  %69 = vmatpush1.msra.mxu0 0.0
  %70 = vmatprep.subr.mxu0 0.0
  %71 = vmatpush1.msra.mxu0 0.0
  %72 = vmatprep.subr.mxu0 0.0
  %73 = vmatpush1.msra.mxu0 0.0
  %74 = vmatprep.subr.mxu0 0.0
  %75 = vmatpush1.msra.mxu0 0.0
  %76 = vmatprep.subr.mxu0 0.0
  %77 = vmatpush1.msra.mxu0 0.0
  %78 = vmatprep.subr.mxu0 0.0
  %79 = vmatpush1.msra.mxu0 0.0
  %80 = vmatprep.subr.mxu0 0.0
  %81 = vmatpush1.msra.mxu0 0.0
  %82 = vmatprep.subr.mxu0 0.0
  %83 = vmatpush1.msra.mxu0 0.0
  %84 = vmatprep.subr.mxu0 0.0
  %85 = vmatpush1.msra.mxu0 0.0
  %86 = vmatprep.subr.mxu0 0.0
  %87 = vmatpush1.msra.mxu0 0.0
  %88 = vmatprep.subr.mxu0 0.0
  %89 = vmatpush1.msra.mxu0 0.0
  %90 = vmatprep.subr.mxu0 0.0
  %91 = vmatpush1.msra.mxu0 0.0
  %92 = vmatprep.subr.mxu0 0.0
  %93 = vmatpush1.msra.mxu0 0.0
  %94 = vmatprep.subr.mxu0 0.0
  %95 = vmatpush1.msra.mxu0 0.0
  %96 = vmatprep.subr.mxu0 0.0
  %97 = vmatpush1.msra.mxu0 0.0
  %98 = vmatprep.subr.mxu0 0.0
  %99 = vmatpush1.msra.mxu0 0.0
  %100 = vmatprep.subr.mxu0 0.0
  %101 = vmatpush1.msra.mxu0 0.0
  %102 = vmatprep.subr.mxu0 0.0
  %103 = vmatpush1.msra.mxu0 0.0
  %104 = vmatprep.subr.mxu0 0.0
  %105 = vmatpush1.msra.mxu0 0.0
  %106 = vmatprep.subr.mxu0 0.0
  %107 = vmatpush1.msra.mxu0 0.0
  %108 = vmatprep.subr.mxu0 0.0
  %109 = vmatpush1.msra.mxu0 0.0
  %110 = vmatprep.subr.mxu0 0.0
  %111 = vmatpush1.msra.mxu0 0.0
  %112 = vmatprep.subr.mxu0 0.0
  %113 = vmatpush1.msra.mxu0 0.0
  %114 = vmatprep.subr.mxu0 0.0
  %115 = vmatpush1.msra.mxu0 0.0
  %116 = vmatprep.subr.mxu0 0.0
  %117 = vmatpush1.msra.mxu0 0.0
  %118 = vmatprep.subr.mxu0 0.0
  %119 = vmatpush1.msra.mxu0 0.0
  %120 = vmatprep.subr.mxu0 0.0
  %121 = vmatpush1.msra.mxu0 0.0
  %122 = vmatprep.subr.mxu0 0.0
  %123 = vmatpush1.msra.mxu0 0.0
  %124 = vmatprep.mubr.f32.mxu0 0.0
  %125 = vmatmul.mubr.f32.gmra.mrb[0].mxu0 %v58
  %v126 = vpop.f32.mrb[0].mxu0
  %v127 = vadd.f32 0.0, %v126
  %v128 = vpop.f32.mrb[0].mxu0
  %129 = vdwg.mxu0
  %v130 = vmul.f32 %v127, %v127
  %132 = vrot.lane.b32.xlu0 %v130, 24
  %v133 = vpop.permute.xlu0 %132
  %v135 = vsub.f32 %v127, %v133
  %v136 = vmax.f32 %v135, 0.0
  %v137 = vlaneseq
  %v138 = vshrl.u32 %v137, 7
  %v139 = vsub.s32 0, %v138
  %v140 = vrot.slane %v127, %v139
  %142 = vrot.lane.b32.xlu0 %v140, 4
  %v143 = vpop.permute.xlu0 %142
  %v145 = vsub.f32 %v44, %v143
  %147 = vrot.lane.b32.xlu0 %v145, 124
  %v148 = vpop.permute.xlu0 %147
  %v150 = vmul.f32 %v27, %v148
  %v151 = vadd.f32 %v136, 1e-06
  %v152 = vrsqrt.pop %v151
  %v153 = vlaneseq
  %v154 = vshrl.u32 %v153, 7
  %v155 = vsub.s32 0, %v154
  %v156 = vrot.slane %v152, %v155
  %158 = vrot.lane.b32.xlu0 %v156, 104
  %v159 = vpop.permute.xlu0 %158
  %v161 = vmul.f32 %v150, %v159
  %v162 = vadd.f32 %v161, %v28
  %v163 = vld [vmem:[%s3] sm:$0xff]
  %v164 = vld [vmem:[%s3 + $0x8] sm:$0xff]
  %v165 = vld [vmem:[%s3 + $0x10] sm:$0xff]
  %v166 = vld [vmem:[%s3 + $0x18] sm:$0xff]
  %v167 = vld [vmem:[%s3 + $0x20] sm:$0xff]
  %v168 = vld [vmem:[%s3 + $0x28] sm:$0xff]
  %v170 = vlaneseq
  %v171 = vshrl.u32 %v170, 7
  %v172 = vsub.s32 0, %v171
  %v173 = vrot.slane %v30, %v172
  %v174 = vlaneseq
  %v175 = vshrl.u32 %v174, 7
  %v176 = vsub.s32 1, %v175
  %v177 = vrot.slane %v30, %v176
  %v181 = vsel %vm54, %v162, 0
  %183 = vmatprep.subr.mxu0 %v164
  %184 = vmatpush1.msra.mxu0 %v163
  %185 = vmatprep.subr.mxu0 %v166
  %186 = vmatpush1.msra.mxu0 %v165
  %187 = vmatprep.subr.mxu0 %v168
  %188 = vmatpush1.msra.mxu0 %v167
  %189 = vmatprep.subr.mxu0 0.0
  %190 = vmatpush1.msra.mxu0 0.0
  %191 = vmatprep.subr.mxu0 0.0
  %192 = vmatpush1.msra.mxu0 0.0
  %193 = vmatprep.subr.mxu0 0.0
  %194 = vmatpush1.msra.mxu0 0.0
  %195 = vmatprep.subr.mxu0 0.0
  %196 = vmatpush1.msra.mxu0 0.0
  %197 = vmatprep.subr.mxu0 0.0
  %198 = vmatpush1.msra.mxu0 0.0
  %199 = vmatprep.subr.mxu0 0.0
  %200 = vmatpush1.msra.mxu0 0.0
  %201 = vmatprep.subr.mxu0 0.0
  %202 = vmatpush1.msra.mxu0 0.0
  %203 = vmatprep.subr.mxu0 0.0
  %204 = vmatpush1.msra.mxu0 0.0
  %205 = vmatprep.subr.mxu0 0.0
  %206 = vmatpush1.msra.mxu0 0.0
  %207 = vmatprep.subr.mxu0 0.0
  %208 = vmatpush1.msra.mxu0 0.0
  %209 = vmatprep.subr.mxu0 0.0
  %210 = vmatpush1.msra.mxu0 0.0
  %211 = vmatprep.subr.mxu0 0.0
  %212 = vmatpush1.msra.mxu0 0.0
  %213 = vmatprep.subr.mxu0 0.0
  %214 = vmatpush1.msra.mxu0 0.0
  %215 = vmatprep.subr.mxu0 0.0
  %216 = vmatpush1.msra.mxu0 0.0
  %217 = vmatprep.subr.mxu0 0.0
  %218 = vmatpush1.msra.mxu0 0.0
  %219 = vmatprep.subr.mxu0 0.0
  %220 = vmatpush1.msra.mxu0 0.0
  %221 = vmatprep.subr.mxu0 0.0
  %222 = vmatpush1.msra.mxu0 0.0
  %223 = vmatprep.subr.mxu0 0.0
  %224 = vmatpush1.msra.mxu0 0.0
  %225 = vmatprep.subr.mxu0 0.0
  %226 = vmatpush1.msra.mxu0 0.0
  %227 = vmatprep.subr.mxu0 0.0
  %228 = vmatpush1.msra.mxu0 0.0
  %229 = vmatprep.subr.mxu0 0.0
  %230 = vmatpush1.msra.mxu0 0.0
  %231 = vmatprep.subr.mxu0 0.0
  %232 = vmatpush1.msra.mxu0 0.0
  %233 = vmatprep.subr.mxu0 0.0
  %234 = vmatpush1.msra.mxu0 0.0
  %235 = vmatprep.subr.mxu0 0.0
  %236 = vmatpush1.msra.mxu0 0.0
  %237 = vmatprep.subr.mxu0 0.0
  %238 = vmatpush1.msra.mxu0 0.0
  %239 = vmatprep.subr.mxu0 0.0
  %240 = vmatpush1.msra.mxu0 0.0
  %241 = vmatprep.subr.mxu0 0.0
  %242 = vmatpush1.msra.mxu0 0.0
  %243 = vmatprep.subr.mxu0 0.0
  %244 = vmatpush1.msra.mxu0 0.0
  %245 = vmatprep.subr.mxu0 0.0
  %246 = vmatpush1.msra.mxu0 0.0
  %247 = vmatprep.mubr.f32.mxu0 0.0
  %248 = vmatmul.mubr.f32.gmra.mrb[0].mxu0 %v181
  %v249 = vpop.f32.mrb[0].mxu0
  %v250 = vadd.f32 %v173, %v249
  %v251 = vpop.f32.mrb[0].mxu0
  %v252 = vadd.f32 %v177, %v251
  %253 = vdwg.mxu0
  %v254 = vmul.f32 %v250, %v250
  %v255 = vmul.f32 %v252, %v252
  %258 = vrot.lane.b32.xlu0 %v254, 64
  %v259 = vpop.permute.xlu0 %258
  %260 = vrot.lane.b32.xlu0 %v255, 64
  %v261 = vpop.permute.xlu0 %260
  %vm262 = vcmask 523264
  %v263 = vsel %vm262, %v259, %v261
  %v266 = vsel %vm262, %v252, %v259
  %267 = vmatprep.subr.mxu0 %v266
  %268 = vmatpush1.msra.mxu0 %v250
  %269 = vmatprep.subr.mxu0 0.0
  %270 = vmatpush1.msra.mxu0 0.0
  %271 = vmatprep.subr.mxu0 0.0
  %272 = vmatpush1.msra.mxu0 0.0
  %273 = vmatprep.subr.mxu0 0.0
  %274 = vmatpush1.msra.mxu0 0.0
  %275 = vmatprep.subr.mxu0 0.0
  %276 = vmatpush1.msra.mxu0 0.0
  %277 = vmatprep.subr.mxu0 0.0
  %278 = vmatpush1.msra.mxu0 0.0
  %279 = vmatprep.subr.mxu0 0.0
  %280 = vmatpush1.msra.mxu0 0.0
  %281 = vmatprep.subr.mxu0 0.0
  %282 = vmatpush1.msra.mxu0 0.0
  %283 = vmatprep.subr.mxu0 0.0
  %284 = vmatpush1.msra.mxu0 0.0
  %285 = vmatprep.subr.mxu0 0.0
  %286 = vmatpush1.msra.mxu0 0.0
  %287 = vmatprep.subr.mxu0 0.0
  %288 = vmatpush1.msra.mxu0 0.0
  %289 = vmatprep.subr.mxu0 0.0
  %290 = vmatpush1.msra.mxu0 0.0
  %291 = vmatprep.subr.mxu0 0.0
  %292 = vmatpush1.msra.mxu0 0.0
  %293 = vmatprep.subr.mxu0 0.0
  %294 = vmatpush1.msra.mxu0 0.0
  %295 = vmatprep.subr.mxu0 0.0
  %296 = vmatpush1.msra.mxu0 0.0
  %297 = vmatprep.subr.mxu0 0.0
  %298 = vmatpush1.msra.mxu0 0.0
  %299 = vmatprep.subr.mxu0 0.0
  %300 = vmatpush1.msra.mxu0 0.0
  %301 = vmatprep.subr.mxu0 0.0
  %302 = vmatpush1.msra.mxu0 0.0
  %303 = vmatprep.subr.mxu0 0.0
  %304 = vmatpush1.msra.mxu0 0.0
  %305 = vmatprep.subr.mxu0 0.0
  %306 = vmatpush1.msra.mxu0 0.0
  %307 = vmatprep.subr.mxu0 0.0
  %308 = vmatpush1.msra.mxu0 0.0
  %309 = vmatprep.subr.mxu0 0.0
  %310 = vmatpush1.msra.mxu0 0.0
  %311 = vmatprep.subr.mxu0 0.0
  %312 = vmatpush1.msra.mxu0 0.0
  %313 = vmatprep.subr.mxu0 0.0
  %314 = vmatpush1.msra.mxu0 0.0
  %315 = vmatprep.subr.mxu0 0.0
  %316 = vmatpush1.msra.mxu0 0.0
  %317 = vmatprep.subr.mxu0 0.0
  %318 = vmatpush1.msra.mxu0 0.0
  %319 = vmatprep.subr.mxu0 0.0
  %320 = vmatpush1.msra.mxu0 0.0
  %321 = vmatprep.subr.mxu0 0.0
  %322 = vmatpush1.msra.mxu0 0.0
  %323 = vmatprep.subr.mxu0 0.0
  %324 = vmatpush1.msra.mxu0 0.0
  %325 = vmatprep.subr.mxu0 0.0
  %326 = vmatpush1.msra.mxu0 0.0
  %327 = vmatprep.subr.mxu0 0.0
  %328 = vmatpush1.msra.mxu0 0.0
  %329 = vmatprep.subr.mxu0 0.0
  %330 = vmatpush1.msra.mxu0 0.0
  %331 = vmatprep.mubr.f32.mxu0 0.0
  %332 = vmatmul.mubr.f32.gmra.mrb[0].mxu0 %v58
  %v333 = vpop.f32.mrb[0].mxu0
  %v334 = vadd.f32 0.0, %v333
  %v335 = vpop.f32.mrb[0].mxu0
  %v336 = vadd.f32 0.0, %v335
  %337 = vdwg.mxu0
  %338 = vmatprep.subr.mxu0 0.0
  %339 = vmatpush1.msra.mxu0 %v263
  %340 = vmatprep.subr.mxu0 0.0
  %341 = vmatpush1.msra.mxu0 0.0
  %342 = vmatprep.subr.mxu0 0.0
  %343 = vmatpush1.msra.mxu0 0.0
  %344 = vmatprep.subr.mxu0 0.0
  %345 = vmatpush1.msra.mxu0 0.0
  %346 = vmatprep.subr.mxu0 0.0
  %347 = vmatpush1.msra.mxu0 0.0
  %348 = vmatprep.subr.mxu0 0.0
  %349 = vmatpush1.msra.mxu0 0.0
  %350 = vmatprep.subr.mxu0 0.0
  %351 = vmatpush1.msra.mxu0 0.0
  %352 = vmatprep.subr.mxu0 0.0
  %353 = vmatpush1.msra.mxu0 0.0
  %354 = vmatprep.subr.mxu0 0.0
  %355 = vmatpush1.msra.mxu0 0.0
  %356 = vmatprep.subr.mxu0 0.0
  %357 = vmatpush1.msra.mxu0 0.0
  %358 = vmatprep.subr.mxu0 0.0
  %359 = vmatpush1.msra.mxu0 0.0
  %360 = vmatprep.subr.mxu0 0.0
  %361 = vmatpush1.msra.mxu0 0.0
  %362 = vmatprep.subr.mxu0 0.0
  %363 = vmatpush1.msra.mxu0 0.0
  %364 = vmatprep.subr.mxu0 0.0
  %365 = vmatpush1.msra.mxu0 0.0
  %366 = vmatprep.subr.mxu0 0.0
  %367 = vmatpush1.msra.mxu0 0.0
  %368 = vmatprep.subr.mxu0 0.0
  %369 = vmatpush1.msra.mxu0 0.0
  %370 = vmatprep.subr.mxu0 0.0
  %371 = vmatpush1.msra.mxu0 0.0
  %372 = vmatprep.subr.mxu0 0.0
  %373 = vmatpush1.msra.mxu0 0.0
  %374 = vmatprep.subr.mxu0 0.0
  %375 = vmatpush1.msra.mxu0 0.0
  %376 = vmatprep.subr.mxu0 0.0
  %377 = vmatpush1.msra.mxu0 0.0
  %378 = vmatprep.subr.mxu0 0.0
  %379 = vmatpush1.msra.mxu0 0.0
  %380 = vmatprep.subr.mxu0 0.0
  %381 = vmatpush1.msra.mxu0 0.0
  %382 = vmatprep.subr.mxu0 0.0
  %383 = vmatpush1.msra.mxu0 0.0
  %384 = vmatprep.subr.mxu0 0.0
  %385 = vmatpush1.msra.mxu0 0.0
  %386 = vmatprep.subr.mxu0 0.0
  %387 = vmatpush1.msra.mxu0 0.0
  %388 = vmatprep.subr.mxu0 0.0
  %389 = vmatpush1.msra.mxu0 0.0
  %390 = vmatprep.subr.mxu0 0.0
  %391 = vmatpush1.msra.mxu0 0.0
  %392 = vmatprep.subr.mxu0 0.0
  %393 = vmatpush1.msra.mxu0 0.0
  %394 = vmatprep.subr.mxu0 0.0
  %395 = vmatpush1.msra.mxu0 0.0
  %396 = vmatprep.subr.mxu0 0.0
  %397 = vmatpush1.msra.mxu0 0.0
  %398 = vmatprep.subr.mxu0 0.0
  %399 = vmatpush1.msra.mxu0 0.0
  %400 = vmatprep.subr.mxu0 0.0
  %401 = vmatpush1.msra.mxu0 0.0
  %402 = vmatprep.mubr.f32.mxu0 0.0
  %403 = vmatmul.mubr.f32.gmra.mrb[0].mxu0 %v58
  %v404 = vpop.f32.mrb[0].mxu0
  %v405 = vadd.f32 0.0, %v404
  %v406 = vpop.f32.mrb[0].mxu0
  %407 = vdwg.mxu0
  %v408 = vmul.f32 %v334, %v334
  %v409 = vmul.f32 %v336, %v336
  %412 = vrot.lane.b32.xlu0 %v408, 64
  %v413 = vpop.permute.xlu0 %412
  %414 = vrot.lane.b32.xlu0 %v409, 64
  %v415 = vpop.permute.xlu0 %414
  %v416 = vsel %vm262, %v413, %v415
  %v419 = vsub.f32 %v336, %v413
  %v420 = vsub.f32 %v405, %v416
  %v421 = vmax.f32 %v419, 0.0
  %v422 = vmax.f32 %v420, 0.0
  %v423 = vlaneseq
  %v424 = vshrl.u32 %v423, 7
  %v425 = vsub.s32 0, %v424
  %v426 = vrot.slane %v334, %v425
  %v427 = vlaneseq
  %v428 = vshrl.u32 %v427, 7
  %v429 = vsub.s32 0, %v428
  %v430 = vrot.slane %v336, %v429
  %v431 = vsub.f32 %v250, %v426
  %v432 = vsub.f32 %v252, %v430
  %v434 = vlaneseq
  %v435 = vshrl.u32 %v434, 7
  %v436 = vsub.s32 0, %v435
  %v437 = vrot.slane %v32, %v436
  %v438 = vlaneseq
  %v439 = vshrl.u32 %v438, 7
  %v440 = vsub.s32 1, %v439
  %v441 = vrot.slane %v32, %v440
  %v444 = vmul.f32 %v437, %v431
  %v445 = vmul.f32 %v441, %v432
  %v446 = vadd.f32 %v421, 1e-06
  %v447 = vadd.f32 %v422, 1e-06
  %v448 = vrsqrt.pop %v446
  %v449 = vrsqrt.pop %v447
  %v450 = vlaneseq
  %v451 = vshrl.u32 %v450, 7
  %v452 = vsub.s32 0, %v451
  %v453 = vrot.slane %v448, %v452
  %v454 = vlaneseq
  %v455 = vshrl.u32 %v454, 7
  %v456 = vsub.s32 0, %v455
  %v457 = vrot.slane %v449, %v456
  %460 = vrot.lane.b32.xlu0 %v453, 64
  %v461 = vpop.permute.xlu0 %460
  %462 = vrot.lane.b32.xlu0 %v457, 64
  %v463 = vpop.permute.xlu0 %462
  %v464 = vsel %vm262, %v461, %v463
  %v467 = vmul.f32 %v444, %v464
  %v468 = vmul.f32 %v445, %v463
  %v470 = vlaneseq
  %v471 = vshrl.u32 %v470, 7
  %v472 = vsub.s32 0, %v471
  %v473 = vrot.slane %v34, %v472
  %v474 = vlaneseq
  %v475 = vshrl.u32 %v474, 7
  %v476 = vsub.s32 1, %v475
  %v477 = vrot.slane %v34, %v476
  %v480 = vadd.f32 %v467, %v473
  %v481 = vadd.f32 %v468, %v477
  %v482 = vtanh.pop %v480
  %v483 = vtanh.pop %v481
  %v484 = vld [vmem:[%s4] sm:$0xff]
  %v485 = vld [vmem:[%s4 + $0x8] sm:$0xff]
  %v486 = vld [vmem:[%s4 + $0x10] sm:$0xff]
  %v487 = vld [vmem:[%s4 + $0x18] sm:$0xff]
  %v488 = vld [vmem:[%s4 + $0x20] sm:$0xff]
  %v489 = vld [vmem:[%s4 + $0x28] sm:$0xff]
  %v490 = vld [vmem:[%s4 + $0x30] sm:$0xff]
  %v491 = vld [vmem:[%s4 + $0x38] sm:$0xff]
  %v492 = vld [vmem:[%s4 + $0x40] sm:$0xff]
  %v493 = vld [vmem:[%s4 + $0x48] sm:$0xff]
  %v494 = vld [vmem:[%s4 + $0x50] sm:$0xff]
  %v495 = vld [vmem:[%s4 + $0x58] sm:$0xff]
  %v496 = vld [vmem:[%s4 + $0x60] sm:$0xff]
  %v497 = vld [vmem:[%s4 + $0x68] sm:$0xff]
  %v498 = vld [vmem:[%s4 + $0x70] sm:$0xff]
  %v499 = vld [vmem:[%s4 + $0x78] sm:$0xff]
  %v500 = vld [vmem:[%s4 + $0x80] sm:$0xff]
  %v501 = vld [vmem:[%s4 + $0x88] sm:$0xff]
  %v502 = vld [vmem:[%s4 + $0x90] sm:$0xff]
  %v503 = vld [vmem:[%s4 + $0x98] sm:$0xff]
  %v504 = vld [vmem:[%s4 + $0xa0] sm:$0xff]
  %v505 = vld [vmem:[%s4 + $0xa8] sm:$0xff]
  %v506 = vld [vmem:[%s4 + $0xb0] sm:$0xff]
  %v507 = vld [vmem:[%s4 + $0xb8] sm:$0xff]
  %v508 = vld [vmem:[%s4 + $0xc0] sm:$0xff]
  %v509 = vld [vmem:[%s4 + $0xc8] sm:$0xff]
  %v510 = vld [vmem:[%s4 + $0xd0] sm:$0xff]
  %v511 = vld [vmem:[%s4 + $0xd8] sm:$0xff]
  %v512 = vld [vmem:[%s4 + $0xe0] sm:$0xff]
  %v513 = vld [vmem:[%s4 + $0xe8] sm:$0xff]
  %v514 = vld [vmem:[%s4 + $0xf0] sm:$0xff]
  %v515 = vld [vmem:[%s4 + $0xf8] sm:$0xff]
  %v516 = vld [vmem:[%s4 + $0x100] sm:$0xff]
  %v517 = vld [vmem:[%s4 + $0x108] sm:$0xff]
  %v518 = vld [vmem:[%s4 + $0x110] sm:$0xff]
  %v519 = vld [vmem:[%s4 + $0x118] sm:$0xff]
  %v520 = vld [vmem:[%s4 + $0x120] sm:$0xff]
  %v521 = vld [vmem:[%s4 + $0x128] sm:$0xff]
  %v522 = vld [vmem:[%s4 + $0x130] sm:$0xff]
  %v523 = vld [vmem:[%s4 + $0x138] sm:$0xff]
  %v524 = vld [vmem:[%s4 + $0x140] sm:$0xff]
  %v525 = vld [vmem:[%s4 + $0x148] sm:$0xff]
  %v526 = vld [vmem:[%s4 + $0x150] sm:$0xff]
  %v527 = vld [vmem:[%s4 + $0x158] sm:$0xff]
  %v528 = vld [vmem:[%s4 + $0x160] sm:$0xff]
  %v529 = vld [vmem:[%s4 + $0x168] sm:$0xff]
  %v530 = vld [vmem:[%s4 + $0x170] sm:$0xff]
  %v531 = vld [vmem:[%s4 + $0x178] sm:$0xff]
  %v533 = vlaneseq
  %v534 = vshrl.u32 %v533, 7
  %v535 = vsub.s32 0, %v534
  %v536 = vrot.slane %v36, %v535
  %v537 = vlaneseq
  %v538 = vshrl.u32 %v537, 7
  %v539 = vsub.s32 1, %v538
  %v540 = vrot.slane %v36, %v539
  %v544 = vsel %vm262, %v483, 0
  %546 = vmatprep.subr.mxu0 %v485
  %547 = vmatpush1.msra.mxu0 %v484
  %548 = vmatprep.subr.mxu0 %v487
  %549 = vmatpush1.msra.mxu0 %v486
  %550 = vmatprep.subr.mxu0 %v489
  %551 = vmatpush1.msra.mxu0 %v488
  %552 = vmatprep.subr.mxu0 %v491
  %553 = vmatpush1.msra.mxu0 %v490
  %554 = vmatprep.subr.mxu0 %v493
  %555 = vmatpush1.msra.mxu0 %v492
  %556 = vmatprep.subr.mxu0 %v495
  %557 = vmatpush1.msra.mxu0 %v494
  %558 = vmatprep.subr.mxu0 %v497
  %559 = vmatpush1.msra.mxu0 %v496
  %560 = vmatprep.subr.mxu0 %v499
  %561 = vmatpush1.msra.mxu0 %v498
  %562 = vmatprep.subr.mxu0 %v501
  %563 = vmatpush1.msra.mxu0 %v500
  %564 = vmatprep.subr.mxu0 %v503
  %565 = vmatpush1.msra.mxu0 %v502
  %566 = vmatprep.subr.mxu0 %v505
  %567 = vmatpush1.msra.mxu0 %v504
  %568 = vmatprep.subr.mxu0 %v507
  %569 = vmatpush1.msra.mxu0 %v506
  %570 = vmatprep.subr.mxu0 %v509
  %571 = vmatpush1.msra.mxu0 %v508
  %572 = vmatprep.subr.mxu0 %v511
  %573 = vmatpush1.msra.mxu0 %v510
  %574 = vmatprep.subr.mxu0 %v513
  %575 = vmatpush1.msra.mxu0 %v512
  %576 = vmatprep.subr.mxu0 %v515
  %577 = vmatpush1.msra.mxu0 %v514
  %578 = vmatprep.subr.mxu0 %v517
  %579 = vmatpush1.msra.mxu0 %v516
  %580 = vmatprep.subr.mxu0 %v519
  %581 = vmatpush1.msra.mxu0 %v518
  %582 = vmatprep.subr.mxu0 %v521
  %583 = vmatpush1.msra.mxu0 %v520
  %584 = vmatprep.subr.mxu0 %v523
  %585 = vmatpush1.msra.mxu0 %v522
  %586 = vmatprep.subr.mxu0 %v525
  %587 = vmatpush1.msra.mxu0 %v524
  %588 = vmatprep.subr.mxu0 %v527
  %589 = vmatpush1.msra.mxu0 %v526
  %590 = vmatprep.subr.mxu0 %v529
  %591 = vmatpush1.msra.mxu0 %v528
  %592 = vmatprep.subr.mxu0 %v531
  %593 = vmatpush1.msra.mxu0 %v530
  %594 = vmatprep.subr.mxu0 0.0
  %595 = vmatpush1.msra.mxu0 0.0
  %596 = vmatprep.subr.mxu0 0.0
  %597 = vmatpush1.msra.mxu0 0.0
  %598 = vmatprep.subr.mxu0 0.0
  %599 = vmatpush1.msra.mxu0 0.0
  %600 = vmatprep.subr.mxu0 0.0
  %601 = vmatpush1.msra.mxu0 0.0
  %602 = vmatprep.subr.mxu0 0.0
  %603 = vmatpush1.msra.mxu0 0.0
  %604 = vmatprep.subr.mxu0 0.0
  %605 = vmatpush1.msra.mxu0 0.0
  %606 = vmatprep.subr.mxu0 0.0
  %607 = vmatpush1.msra.mxu0 0.0
  %608 = vmatprep.subr.mxu0 0.0
  %609 = vmatpush1.msra.mxu0 0.0
  %610 = vmatprep.mubr.f32.mxu0 %v544
  %611 = vmatmul.mubr.f32.gmra.mrb[0].mxu0 %v482
  %v612 = vpop.f32.mrb[0].mxu0
  %v613 = vadd.f32 %v536, %v612
  %v614 = vpop.f32.mrb[0].mxu0
  %v615 = vadd.f32 %v540, %v614
  %616 = vdwg.mxu0
  %v617 = vmul.f32 %v613, %v613
  %v618 = vmul.f32 %v615, %v615
  %621 = vrot.lane.b32.xlu0 %v617, 64
  %v622 = vpop.permute.xlu0 %621
  %623 = vrot.lane.b32.xlu0 %v618, 64
  %v624 = vpop.permute.xlu0 %623
  %v625 = vsel %vm262, %v622, %v624
  %v628 = vsel %vm262, %v615, %v622
  %629 = vmatprep.subr.mxu0 %v628
  %630 = vmatpush1.msra.mxu0 %v613
  %631 = vmatprep.subr.mxu0 0.0
  %632 = vmatpush1.msra.mxu0 0.0
  %633 = vmatprep.subr.mxu0 0.0
  %634 = vmatpush1.msra.mxu0 0.0
  %635 = vmatprep.subr.mxu0 0.0
  %636 = vmatpush1.msra.mxu0 0.0
  %637 = vmatprep.subr.mxu0 0.0
  %638 = vmatpush1.msra.mxu0 0.0
  %639 = vmatprep.subr.mxu0 0.0
  %640 = vmatpush1.msra.mxu0 0.0
  %641 = vmatprep.subr.mxu0 0.0
  %642 = vmatpush1.msra.mxu0 0.0
  %643 = vmatprep.subr.mxu0 0.0
  %644 = vmatpush1.msra.mxu0 0.0
  %645 = vmatprep.subr.mxu0 0.0
  %646 = vmatpush1.msra.mxu0 0.0
  %647 = vmatprep.subr.mxu0 0.0
  %648 = vmatpush1.msra.mxu0 0.0
  %649 = vmatprep.subr.mxu0 0.0
  %650 = vmatpush1.msra.mxu0 0.0
  %651 = vmatprep.subr.mxu0 0.0
  %652 = vmatpush1.msra.mxu0 0.0
  %653 = vmatprep.subr.mxu0 0.0
  %654 = vmatpush1.msra.mxu0 0.0
  %655 = vmatprep.subr.mxu0 0.0
  %656 = vmatpush1.msra.mxu0 0.0
  %657 = vmatprep.subr.mxu0 0.0
  %658 = vmatpush1.msra.mxu0 0.0
  %659 = vmatprep.subr.mxu0 0.0
  %660 = vmatpush1.msra.mxu0 0.0
  %661 = vmatprep.subr.mxu0 0.0
  %662 = vmatpush1.msra.mxu0 0.0
  %663 = vmatprep.subr.mxu0 0.0
  %664 = vmatpush1.msra.mxu0 0.0
  %665 = vmatprep.subr.mxu0 0.0
  %666 = vmatpush1.msra.mxu0 0.0
  %667 = vmatprep.subr.mxu0 0.0
  %668 = vmatpush1.msra.mxu0 0.0
  %669 = vmatprep.subr.mxu0 0.0
  %670 = vmatpush1.msra.mxu0 0.0
  %671 = vmatprep.subr.mxu0 0.0
  %672 = vmatpush1.msra.mxu0 0.0
  %673 = vmatprep.subr.mxu0 0.0
  %674 = vmatpush1.msra.mxu0 0.0
  %675 = vmatprep.subr.mxu0 0.0
  %676 = vmatpush1.msra.mxu0 0.0
  %677 = vmatprep.subr.mxu0 0.0
  %678 = vmatpush1.msra.mxu0 0.0
  %679 = vmatprep.subr.mxu0 0.0
  %680 = vmatpush1.msra.mxu0 0.0
  %681 = vmatprep.subr.mxu0 0.0
  %682 = vmatpush1.msra.mxu0 0.0
  %683 = vmatprep.subr.mxu0 0.0
  %684 = vmatpush1.msra.mxu0 0.0
  %685 = vmatprep.subr.mxu0 0.0
  %686 = vmatpush1.msra.mxu0 0.0
  %687 = vmatprep.subr.mxu0 0.0
  %688 = vmatpush1.msra.mxu0 0.0
  %689 = vmatprep.subr.mxu0 0.0
  %690 = vmatpush1.msra.mxu0 0.0
  %691 = vmatprep.subr.mxu0 0.0
  %692 = vmatpush1.msra.mxu0 0.0
  %693 = vmatprep.mubr.f32.mxu0 0.0
  %694 = vmatmul.mubr.f32.gmra.mrb[0].mxu0 %v58
  %v695 = vpop.f32.mrb[0].mxu0
  %v696 = vadd.f32 0.0, %v695
  %v697 = vpop.f32.mrb[0].mxu0
  %v698 = vadd.f32 0.0, %v697
  %699 = vdwg.mxu0
  %700 = vmatprep.subr.mxu0 0.0
  %701 = vmatpush1.msra.mxu0 %v625
  %702 = vmatprep.subr.mxu0 0.0
  %703 = vmatpush1.msra.mxu0 0.0
  %704 = vmatprep.subr.mxu0 0.0
  %705 = vmatpush1.msra.mxu0 0.0
  %706 = vmatprep.subr.mxu0 0.0
  %707 = vmatpush1.msra.mxu0 0.0
  %708 = vmatprep.subr.mxu0 0.0
  %709 = vmatpush1.msra.mxu0 0.0
  %710 = vmatprep.subr.mxu0 0.0
  %711 = vmatpush1.msra.mxu0 0.0
  %712 = vmatprep.subr.mxu0 0.0
  %713 = vmatpush1.msra.mxu0 0.0
  %714 = vmatprep.subr.mxu0 0.0
  %715 = vmatpush1.msra.mxu0 0.0
  %716 = vmatprep.subr.mxu0 0.0
  %717 = vmatpush1.msra.mxu0 0.0
  %718 = vmatprep.subr.mxu0 0.0
  %719 = vmatpush1.msra.mxu0 0.0
  %720 = vmatprep.subr.mxu0 0.0
  %721 = vmatpush1.msra.mxu0 0.0
  %722 = vmatprep.subr.mxu0 0.0
  %723 = vmatpush1.msra.mxu0 0.0
  %724 = vmatprep.subr.mxu0 0.0
  %725 = vmatpush1.msra.mxu0 0.0
  %726 = vmatprep.subr.mxu0 0.0
  %727 = vmatpush1.msra.mxu0 0.0
  %728 = vmatprep.subr.mxu0 0.0
  %729 = vmatpush1.msra.mxu0 0.0
  %730 = vmatprep.subr.mxu0 0.0
  %731 = vmatpush1.msra.mxu0 0.0
  %732 = vmatprep.subr.mxu0 0.0
  %733 = vmatpush1.msra.mxu0 0.0
  %734 = vmatprep.subr.mxu0 0.0
  %735 = vmatpush1.msra.mxu0 0.0
  %736 = vmatprep.subr.mxu0 0.0
  %737 = vmatpush1.msra.mxu0 0.0
  %738 = vmatprep.subr.mxu0 0.0
  %739 = vmatpush1.msra.mxu0 0.0
  %740 = vmatprep.subr.mxu0 0.0
  %741 = vmatpush1.msra.mxu0 0.0
  %742 = vmatprep.subr.mxu0 0.0
  %743 = vmatpush1.msra.mxu0 0.0
  %744 = vmatprep.subr.mxu0 0.0
  %745 = vmatpush1.msra.mxu0 0.0
  %746 = vmatprep.subr.mxu0 0.0
  %747 = vmatpush1.msra.mxu0 0.0
  %748 = vmatprep.subr.mxu0 0.0
  %749 = vmatpush1.msra.mxu0 0.0
  %750 = vmatprep.subr.mxu0 0.0
  %751 = vmatpush1.msra.mxu0 0.0
  %752 = vmatprep.subr.mxu0 0.0
  %753 = vmatpush1.msra.mxu0 0.0
  %754 = vmatprep.subr.mxu0 0.0
  %755 = vmatpush1.msra.mxu0 0.0
  %756 = vmatprep.subr.mxu0 0.0
  %757 = vmatpush1.msra.mxu0 0.0
  %758 = vmatprep.subr.mxu0 0.0
  %759 = vmatpush1.msra.mxu0 0.0
  %760 = vmatprep.subr.mxu0 0.0
  %761 = vmatpush1.msra.mxu0 0.0
  %762 = vmatprep.subr.mxu0 0.0
  %763 = vmatpush1.msra.mxu0 0.0
  %764 = vmatprep.mubr.f32.mxu0 0.0
  %765 = vmatmul.mubr.f32.gmra.mrb[0].mxu0 %v58
  %v766 = vpop.f32.mrb[0].mxu0
  %v767 = vadd.f32 0.0, %v766
  %v768 = vpop.f32.mrb[0].mxu0
  %769 = vdwg.mxu0
  %v770 = vmul.f32 %v696, %v696
  %v771 = vmul.f32 %v698, %v698
  %774 = vrot.lane.b32.xlu0 %v770, 64
  %v775 = vpop.permute.xlu0 %774
  %776 = vrot.lane.b32.xlu0 %v771, 64
  %v777 = vpop.permute.xlu0 %776
  %v778 = vsel %vm262, %v775, %v777
  %v781 = vsub.f32 %v698, %v775
  %v782 = vsub.f32 %v767, %v778
  %v783 = vmax.f32 %v781, 0.0
  %v784 = vmax.f32 %v782, 0.0
  %v785 = vlaneseq
  %v786 = vshrl.u32 %v785, 7
  %v787 = vsub.s32 0, %v786
  %v788 = vrot.slane %v696, %v787
  %v789 = vlaneseq
  %v790 = vshrl.u32 %v789, 7
  %v791 = vsub.s32 0, %v790
  %v792 = vrot.slane %v698, %v791
  %v793 = vsub.f32 %v613, %v788
  %v794 = vsub.f32 %v615, %v792
  %v796 = vlaneseq
  %v797 = vshrl.u32 %v796, 7
  %v798 = vsub.s32 0, %v797
  %v799 = vrot.slane %v38, %v798
  %v800 = vlaneseq
  %v801 = vshrl.u32 %v800, 7
  %v802 = vsub.s32 1, %v801
  %v803 = vrot.slane %v38, %v802
  %v806 = vmul.f32 %v799, %v793
  %v807 = vmul.f32 %v803, %v794
  %v808 = vadd.f32 %v783, 1e-06
  %v809 = vadd.f32 %v784, 1e-06
  %v810 = vrsqrt.pop %v808
  %v811 = vrsqrt.pop %v809
  %v812 = vlaneseq
  %v813 = vshrl.u32 %v812, 7
  %v814 = vsub.s32 0, %v813
  %v815 = vrot.slane %v810, %v814
  %v816 = vlaneseq
  %v817 = vshrl.u32 %v816, 7
  %v818 = vsub.s32 0, %v817
  %v819 = vrot.slane %v811, %v818
  %822 = vrot.lane.b32.xlu0 %v815, 64
  %v823 = vpop.permute.xlu0 %822
  %824 = vrot.lane.b32.xlu0 %v819, 64
  %v825 = vpop.permute.xlu0 %824
  %v826 = vsel %vm262, %v823, %v825
  %v829 = vmul.f32 %v806, %v826
  %v830 = vmul.f32 %v807, %v825
  %v832 = vlaneseq
  %v833 = vshrl.u32 %v832, 7
  %v834 = vsub.s32 0, %v833
  %v835 = vrot.slane %v40, %v834
  %v836 = vlaneseq
  %v837 = vshrl.u32 %v836, 7
  %v838 = vsub.s32 1, %v837
  %v839 = vrot.slane %v40, %v838
  %v842 = vadd.f32 %v829, %v835
  %v843 = vadd.f32 %v830, %v839
  %v844 = vtanh.pop %v842
  %v845 = vtanh.pop %v843
  %v846 = vld [vmem:[%s5] sm:$0xff]
  %v847 = vld [vmem:[%s5 + $0x8] sm:$0xff]
  %v848 = vld [vmem:[%s5 + $0x10] sm:$0xff]
  %v849 = vld [vmem:[%s5 + $0x18] sm:$0xff]
  %v850 = vld [vmem:[%s5 + $0x20] sm:$0xff]
  %v851 = vld [vmem:[%s5 + $0x28] sm:$0xff]
  %v852 = vld [vmem:[%s5 + $0x30] sm:$0xff]
  %v853 = vld [vmem:[%s5 + $0x38] sm:$0xff]
  %v854 = vld [vmem:[%s5 + $0x40] sm:$0xff]
  %v855 = vld [vmem:[%s5 + $0x48] sm:$0xff]
  %v856 = vld [vmem:[%s5 + $0x50] sm:$0xff]
  %v857 = vld [vmem:[%s5 + $0x58] sm:$0xff]
  %v858 = vld [vmem:[%s5 + $0x60] sm:$0xff]
  %v859 = vld [vmem:[%s5 + $0x68] sm:$0xff]
  %v860 = vld [vmem:[%s5 + $0x70] sm:$0xff]
  %v861 = vld [vmem:[%s5 + $0x78] sm:$0xff]
  %v862 = vld [vmem:[%s5 + $0x80] sm:$0xff]
  %v863 = vld [vmem:[%s5 + $0x88] sm:$0xff]
  %v864 = vld [vmem:[%s5 + $0x90] sm:$0xff]
  %v865 = vld [vmem:[%s5 + $0x98] sm:$0xff]
  %v866 = vld [vmem:[%s5 + $0xa0] sm:$0xff]
  %v867 = vld [vmem:[%s5 + $0xa8] sm:$0xff]
  %v868 = vld [vmem:[%s5 + $0xb0] sm:$0xff]
  %v869 = vld [vmem:[%s5 + $0xb8] sm:$0xff]
  %v871 = vsel %vm262, %v845, 0
  %873 = vmatprep.subr.mxu0 0.0
  %874 = vmatpush1.msra.mxu0 %v846
  %875 = vmatprep.subr.mxu0 0.0
  %876 = vmatpush1.msra.mxu0 %v847
  %877 = vmatprep.subr.mxu0 0.0
  %878 = vmatpush1.msra.mxu0 %v848
  %879 = vmatprep.subr.mxu0 0.0
  %880 = vmatpush1.msra.mxu0 %v849
  %881 = vmatprep.subr.mxu0 0.0
  %882 = vmatpush1.msra.mxu0 %v850
  %883 = vmatprep.subr.mxu0 0.0
  %884 = vmatpush1.msra.mxu0 %v851
  %885 = vmatprep.subr.mxu0 0.0
  %886 = vmatpush1.msra.mxu0 %v852
  %887 = vmatprep.subr.mxu0 0.0
  %888 = vmatpush1.msra.mxu0 %v853
  %889 = vmatprep.subr.mxu0 0.0
  %890 = vmatpush1.msra.mxu0 %v854
  %891 = vmatprep.subr.mxu0 0.0
  %892 = vmatpush1.msra.mxu0 %v855
  %893 = vmatprep.subr.mxu0 0.0
  %894 = vmatpush1.msra.mxu0 %v856
  %895 = vmatprep.subr.mxu0 0.0
  %896 = vmatpush1.msra.mxu0 %v857
  %897 = vmatprep.subr.mxu0 0.0
  %898 = vmatpush1.msra.mxu0 %v858
  %899 = vmatprep.subr.mxu0 0.0
  %900 = vmatpush1.msra.mxu0 %v859
  %901 = vmatprep.subr.mxu0 0.0
  %902 = vmatpush1.msra.mxu0 %v860
  %903 = vmatprep.subr.mxu0 0.0
  %904 = vmatpush1.msra.mxu0 %v861
  %905 = vmatprep.subr.mxu0 0.0
  %906 = vmatpush1.msra.mxu0 %v862
  %907 = vmatprep.subr.mxu0 0.0
  %908 = vmatpush1.msra.mxu0 %v863
  %909 = vmatprep.subr.mxu0 0.0
  %910 = vmatpush1.msra.mxu0 %v864
  %911 = vmatprep.subr.mxu0 0.0
  %912 = vmatpush1.msra.mxu0 %v865
  %913 = vmatprep.subr.mxu0 0.0
  %914 = vmatpush1.msra.mxu0 %v866
  %915 = vmatprep.subr.mxu0 0.0
  %916 = vmatpush1.msra.mxu0 %v867
  %917 = vmatprep.subr.mxu0 0.0
  %918 = vmatpush1.msra.mxu0 %v868
  %919 = vmatprep.subr.mxu0 0.0
  %920 = vmatpush1.msra.mxu0 %v869
  %921 = vmatprep.subr.mxu0 0.0
  %922 = vmatpush1.msra.mxu0 0.0
  %923 = vmatprep.subr.mxu0 0.0
  %924 = vmatpush1.msra.mxu0 0.0
  %925 = vmatprep.subr.mxu0 0.0
  %926 = vmatpush1.msra.mxu0 0.0
  %927 = vmatprep.subr.mxu0 0.0
  %928 = vmatpush1.msra.mxu0 0.0
  %929 = vmatprep.subr.mxu0 0.0
  %930 = vmatpush1.msra.mxu0 0.0
  %931 = vmatprep.subr.mxu0 0.0
  %932 = vmatpush1.msra.mxu0 0.0
  %933 = vmatprep.subr.mxu0 0.0
  %934 = vmatpush1.msra.mxu0 0.0
  %935 = vmatprep.subr.mxu0 0.0
  %936 = vmatpush1.msra.mxu0 0.0
  %937 = vmatprep.mubr.f32.mxu0 %v871
  %938 = vmatmul.mubr.f32.gmra.mrb[0].mxu0 %v844
  %v939 = vpop.f32.mrb[0].mxu0
  %v940 = vadd.f32 %v41, %v939
  %v941 = vpop.f32.mrb[0].mxu0
  %942 = vdwg.mxu0
  %v943 = vmul.f32 %v940, %v940
  %945 = vrot.lane.b32.xlu0 %v943, 24
  %v946 = vpop.permute.xlu0 %945
  %v948 = vsel %vm54, %v940, %v946
  %949 = vmatprep.subr.mxu0 0.0
  %950 = vmatpush1.msra.mxu0 %v948
  %951 = vmatprep.subr.mxu0 0.0
  %952 = vmatpush1.msra.mxu0 0.0
  %953 = vmatprep.subr.mxu0 0.0
  %954 = vmatpush1.msra.mxu0 0.0
  %955 = vmatprep.subr.mxu0 0.0
  %956 = vmatpush1.msra.mxu0 0.0
  %957 = vmatprep.subr.mxu0 0.0
  %958 = vmatpush1.msra.mxu0 0.0
  %959 = vmatprep.subr.mxu0 0.0
  %960 = vmatpush1.msra.mxu0 0.0
  %961 = vmatprep.subr.mxu0 0.0
  %962 = vmatpush1.msra.mxu0 0.0
  %963 = vmatprep.subr.mxu0 0.0
  %964 = vmatpush1.msra.mxu0 0.0
  %965 = vmatprep.subr.mxu0 0.0
  %966 = vmatpush1.msra.mxu0 0.0
  %967 = vmatprep.subr.mxu0 0.0
  %968 = vmatpush1.msra.mxu0 0.0
  %969 = vmatprep.subr.mxu0 0.0
  %970 = vmatpush1.msra.mxu0 0.0
  %971 = vmatprep.subr.mxu0 0.0
  %972 = vmatpush1.msra.mxu0 0.0
  %973 = vmatprep.subr.mxu0 0.0
  %974 = vmatpush1.msra.mxu0 0.0
  %975 = vmatprep.subr.mxu0 0.0
  %976 = vmatpush1.msra.mxu0 0.0
  %977 = vmatprep.subr.mxu0 0.0
  %978 = vmatpush1.msra.mxu0 0.0
  %979 = vmatprep.subr.mxu0 0.0
  %980 = vmatpush1.msra.mxu0 0.0
  %981 = vmatprep.subr.mxu0 0.0
  %982 = vmatpush1.msra.mxu0 0.0
  %983 = vmatprep.subr.mxu0 0.0
  %984 = vmatpush1.msra.mxu0 0.0
  %985 = vmatprep.subr.mxu0 0.0
  %986 = vmatpush1.msra.mxu0 0.0
  %987 = vmatprep.subr.mxu0 0.0
  %988 = vmatpush1.msra.mxu0 0.0
  %989 = vmatprep.subr.mxu0 0.0
  %990 = vmatpush1.msra.mxu0 0.0
  %991 = vmatprep.subr.mxu0 0.0
  %992 = vmatpush1.msra.mxu0 0.0
  %993 = vmatprep.subr.mxu0 0.0
  %994 = vmatpush1.msra.mxu0 0.0
  %995 = vmatprep.subr.mxu0 0.0
  %996 = vmatpush1.msra.mxu0 0.0
  %997 = vmatprep.subr.mxu0 0.0
  %998 = vmatpush1.msra.mxu0 0.0
  %999 = vmatprep.subr.mxu0 0.0
  %1000 = vmatpush1.msra.mxu0 0.0
  %1001 = vmatprep.subr.mxu0 0.0
  %1002 = vmatpush1.msra.mxu0 0.0
  %1003 = vmatprep.subr.mxu0 0.0
  %1004 = vmatpush1.msra.mxu0 0.0
  %1005 = vmatprep.subr.mxu0 0.0
  %1006 = vmatpush1.msra.mxu0 0.0
  %1007 = vmatprep.subr.mxu0 0.0
  %1008 = vmatpush1.msra.mxu0 0.0
  %1009 = vmatprep.subr.mxu0 0.0
  %1010 = vmatpush1.msra.mxu0 0.0
  %1011 = vmatprep.subr.mxu0 0.0
  %1012 = vmatpush1.msra.mxu0 0.0
  %1013 = vmatprep.mubr.f32.mxu0 0.0
  %1014 = vmatmul.mubr.f32.gmra.mrb[0].mxu0 %v58
  %v1015 = vpop.f32.mrb[0].mxu0
  %v1016 = vadd.f32 0.0, %v1015
  %v1017 = vpop.f32.mrb[0].mxu0
  %1018 = vdwg.mxu0
  %v1019 = vmul.f32 %v1016, %v1016
  %1021 = vrot.lane.b32.xlu0 %v1019, 24
  %v1022 = vpop.permute.xlu0 %1021
  %v1024 = vsub.f32 %v1016, %v1022
  %v1025 = vmax.f32 %v1024, 0.0
  %v1026 = vlaneseq
  %v1027 = vshrl.u32 %v1026, 7
  %v1028 = vsub.s32 0, %v1027
  %v1029 = vrot.slane %v1016, %v1028
  %v1030 = vsub.f32 %v940, %v1029
  %v1031 = vmul.f32 %v42, %v1030
  %v1032 = vadd.f32 %v1025, 1e-06
  %v1033 = vrsqrt.pop %v1032
  %v1034 = vlaneseq
  %v1035 = vshrl.u32 %v1034, 7
  %v1036 = vsub.s32 0, %v1035
  %v1037 = vrot.slane %v1033, %v1036
  %1039 = vrot.lane.b32.xlu0 %v1037, 104
  %v1040 = vpop.permute.xlu0 %1039
  %v1042 = vmul.f32 %v1031, %v1040
  %v1043 = vadd.f32 %v1042, %v43
  %v1044 = vld [vmem:[%s2 + $0x13] ss:$0 sm:$0xff]
  %1046 = vrot.lane.b32.xlu0 %v1043, 4
  %v1047 = vpop.permute.xlu0 %1046
  %vm1049 = vcmask 31744
  %v1050 = vsel %vm1049, %v1044, %v1047
  %s1051 = sld [smem:[#allocation2]]
  %v1052 = vstv %s1051
  %v1053 = vld [vmem:[%s1] sm:$0xff]
  %v1054 = vmul.f32 %v1050, %v1050
  %v1055 = vsel %vm1049, %v1054, 0.0
  %1056 = vadd.xlane.f32.xlu0 %v1055
  %v1057 = vpop.xlane.xlu0 %1056
  %v1058 = vmul.f32 %v1057, -1.0
  %v1059 = vmul.f32 %v1050, %v1053
  %v1060 = vsel %vm1049, %v1059, 0.0
  %1061 = vadd.xlane.f32.xlu0 %v1060
  %v1062 = vpop.xlane.xlu0 %1061
  %v1063 = vmul.f32 %v1062, 1.4142135
  %v1064 = vmul.f32 %v1058, 0.125
  %v1065 = vsub.f32 %v1052, %v1064
  %v1066 = vadd.f32 %v1065, %v1063
  %1068 = vrot.lane.b32.xlu0 %v1054, 124
  %v1069 = vpop.permute.xlu0 %1068
  %v1071 = vsel %vm1049, %v1069, 0.0
  %1072 = vadd.xlane.f32.xlu0 %v1071
  %v1073 = vpop.xlane.xlu0 %1072
  %v1074 = vmul.f32 %v1073, -1.0
  %1076 = vrot.lane.b32.xlu0 %v1059, 124
  %v1077 = vpop.permute.xlu0 %1076
  %v1079 = vsel %vm1049, %v1077, 0.0
  %1080 = vadd.xlane.f32.xlu0 %v1079
  %v1081 = vpop.xlane.xlu0 %1080
  %v1082 = vmul.f32 %v1081, 1.4142135
  %v1083 = vmul.f32 %v1074, 0.125
  %v1084 = vsub.f32 %v1066, %v1083
  %v1085 = vadd.f32 %v1084, %v1082
  %1086 = vrot.lane.b32.xlu0 %v1054, 120
  %v1087 = vpop.permute.xlu0 %1086
  %v1089 = vsel %vm1049, %v1087, 0.0
  %1090 = vadd.xlane.f32.xlu0 %v1089
  %v1091 = vpop.xlane.xlu0 %1090
  %v1092 = vmul.f32 %v1091, -1.0
  %1093 = vrot.lane.b32.xlu0 %v1059, 120
  %v1094 = vpop.permute.xlu0 %1093
  %v1096 = vsel %vm1049, %v1094, 0.0
  %1097 = vadd.xlane.f32.xlu0 %v1096
  %v1098 = vpop.xlane.xlu0 %1097
  %v1099 = vmul.f32 %v1098, 1.4142135
  %v1100 = vmul.f32 %v1092, 0.125
  %v1101 = vsub.f32 %v1085, %v1100
  %v1102 = vadd.f32 %v1101, %v1099
  %1103 = vrot.lane.b32.xlu0 %v1054, 116
  %v1104 = vpop.permute.xlu0 %1103
  %v1106 = vsel %vm1049, %v1104, 0.0
  %1107 = vadd.xlane.f32.xlu0 %v1106
  %v1108 = vpop.xlane.xlu0 %1107
  %v1109 = vmul.f32 %v1108, -1.0
  %1110 = vrot.lane.b32.xlu0 %v1059, 116
  %v1111 = vpop.permute.xlu0 %1110
  %v1113 = vsel %vm1049, %v1111, 0.0
  %1114 = vadd.xlane.f32.xlu0 %v1113
  %v1115 = vpop.xlane.xlu0 %1114
  %v1116 = vmul.f32 %v1115, 1.4142135
  %v1117 = vmul.f32 %v1109, 0.125
  %v1118 = vsub.f32 %v1102, %v1117
  %v1119 = vadd.f32 %v1118, %v1116
  %1120 = vrot.lane.b32.xlu0 %v1054, 112
  %v1121 = vpop.permute.xlu0 %1120
  %v1123 = vsel %vm1049, %v1121, 0.0
  %1124 = vadd.xlane.f32.xlu0 %v1123
  %v1125 = vpop.xlane.xlu0 %1124
  %v1126 = vmul.f32 %v1125, -1.0
  %1127 = vrot.lane.b32.xlu0 %v1059, 112
  %v1128 = vpop.permute.xlu0 %1127
  %v1130 = vsel %vm1049, %v1128, 0.0
  %1131 = vadd.xlane.f32.xlu0 %v1130
  %v1132 = vpop.xlane.xlu0 %1131
  %v1133 = vmul.f32 %v1132, 1.4142135
  %v1134 = vmul.f32 %v1126, 0.125
  %v1135 = vsub.f32 %v1119, %v1134
  %v1136 = vadd.f32 %v1135, %v1133
  %1137 = vrot.lane.b32.xlu0 %v1054, 108
  %v1138 = vpop.permute.xlu0 %1137
  %v1140 = vsel %vm1049, %v1138, 0.0
  %1141 = vadd.xlane.f32.xlu0 %v1140
  %v1142 = vpop.xlane.xlu0 %1141
  %v1143 = vmul.f32 %v1142, -1.0
  %1144 = vrot.lane.b32.xlu0 %v1059, 108
  %v1145 = vpop.permute.xlu0 %1144
  %v1147 = vsel %vm1049, %v1145, 0.0
  %1148 = vadd.xlane.f32.xlu0 %v1147
  %v1149 = vpop.xlane.xlu0 %1148
  %v1150 = vmul.f32 %v1149, 1.4142135
  %v1151 = vmul.f32 %v1143, 0.125
  %v1152 = vsub.f32 %v1136, %v1151
  %v1153 = vadd.f32 %v1152, %v1150
  %1154 = vrot.lane.b32.xlu0 %v1054, 104
  %v1155 = vpop.permute.xlu0 %1154
  %v1157 = vsel %vm1049, %v1155, 0.0
  %1158 = vadd.xlane.f32.xlu0 %v1157
  %v1159 = vpop.xlane.xlu0 %1158
  %v1160 = vmul.f32 %v1159, -1.0
  %1161 = vrot.lane.b32.xlu0 %v1059, 104
  %v1162 = vpop.permute.xlu0 %1161
  %v1164 = vsel %vm1049, %v1162, 0.0
  %1165 = vadd.xlane.f32.xlu0 %v1164
  %v1166 = vpop.xlane.xlu0 %1165
  %v1167 = vmul.f32 %v1166, 1.4142135
  %v1168 = vmul.f32 %v1160, 0.125
  %v1169 = vsub.f32 %v1153, %v1168
  %v1170 = vadd.f32 %v1169, %v1167
  %1171 = vrot.lane.b32.xlu0 %v45, 96
  %v1172 = vpop.permute.xlu0 %1171
  %v1174 = vsel %vm1049, %v1172, 0.0
  %1175 = vadd.xlane.f32.xlu0 %v1174
  %v1176 = vpop.xlane.xlu0 %1175
  %v1177 = vadd.f32 %v1176, 1.0
  %v1178 = vmul.f32 %v1177, 0.5
  %v1179 = vlog2.pop %v1178
  %v1180 = vmul.f32 %v1179, 0.6931472
  %v1181 = vsub.f32 %v1170, %v1180
  %v1182 = vmul.f32 %v1181, %v1181
  %vm1183 = vcmask 7168
  %v1184 = vsel %vm1183, %v1066, %v1085
  %vm1185 = vcmask 15360
  %v1186 = vsel %vm1185, %v1184, %v1102
  %vm1187 = vcmask 23552
  %v1188 = vsel %vm1187, %v1186, %v1119
  %v1189 = vsel %vm1049, %v1188, %v1136
  %vm1190 = vcmask 39936
  %v1191 = vsel %vm1190, %v1189, %v1153
  %vm1192 = vcmask 48128
  %v1193 = vsel %vm1192, %v1191, %v1170
  %vm1194 = vcmask 56320
  %v1195 = vsel %vm1194, %v1193, %v1058
  %v1196 = vsel %vm56, %v1195, %v1074
  %vm1197 = vcmask 72704
  %v1198 = vsel %vm1197, %v1196, %v1092
  %vm1199 = vcmask 80896
  %v1200 = vsel %vm1199, %v1198, %v1109
  %vm1201 = vcmask 89088
  %v1202 = vsel %vm1201, %v1200, %v1126
  %vm1203 = vcmask 97280
  %v1204 = vsel %vm1203, %v1202, %v1143
  %vm1205 = vcmask 105472
  %v1206 = vsel %vm1205, %v1204, %v1160
  %vm1207 = vcmask 113664
  %v1208 = vsel %vm1207, %v1206, %v1063
  %vm1209 = vcmask 121856
  %v1210 = vsel %vm1209, %v1208, %v1082
  %1211 = vrot.lane.b32.xlu0 %v44, 5
  %v1212 = vpop.permute.xlu0 %1211
  %1214 = vrot.lane.b32.xlu0 %v44, 2
  %v1215 = vpop.permute.xlu0 %1214
  %1217 = vrot.lane.b32.xlu0 %v44, 127
  %v1218 = vpop.permute.xlu0 %1217
  %1220 = vrot.lane.b32.xlu0 %v44, 121
  %v1221 = vpop.permute.xlu0 %1220
  %1223 = vrot.lane.b32.xlu0 %v44, 118
  %v1224 = vpop.permute.xlu0 %1223
  %1226 = vrot.lane.b32.xlu0 %v44, 115
  %v1227 = vpop.permute.xlu0 %1226
  %v1229 = vsel %vm1183, %v1099, %v1116
  %v1230 = vsel %vm1185, %v1229, %v1133
  %v1231 = vsel %vm1187, %v1230, %v1150
  %v1232 = vsel %vm1049, %v1231, %v1167
  %v1233 = vsel %vm1190, %v1232, %v1212
  %v1234 = vsel %vm1192, %v1233, %v1215
  %v1235 = vsel %vm1194, %v1234, %v1218
  %v1236 = vsel %vm56, %v1235, %v48
  %v1237 = vsel %vm1197, %v1236, %v1221
  %v1238 = vsel %vm1199, %v1237, %v1224
  %v1239 = vsel %vm1201, %v1238, %v1227
  %v1240 = vsel %vm1203, %v1239, %v1180
  %v1241 = vsel %vm1205, %v1240, %v1182
  %v1242 = vsel %vm1207, %v1241, 0.0
  %1244 = vrot.lane.b32.xlu0 %v1242, 16
  %v1245 = vpop.permute.xlu0 %1244
  %vm1247 = vcmask 130048
  %v1248 = vsel %vm1247, %v1210, %v1245
  %1249 = vmatprep.subr.mxu0 0.0
  %1250 = vmatpush1.msra.mxu0 %v1248
  %1251 = vmatprep.subr.mxu0 0.0
  %1252 = vmatpush1.msra.mxu0 0.0
  %1253 = vmatprep.subr.mxu0 0.0
  %1254 = vmatpush1.msra.mxu0 0.0
  %1255 = vmatprep.subr.mxu0 0.0
  %1256 = vmatpush1.msra.mxu0 0.0
  %1257 = vmatprep.subr.mxu0 0.0
  %1258 = vmatpush1.msra.mxu0 0.0
  %1259 = vmatprep.subr.mxu0 0.0
  %1260 = vmatpush1.msra.mxu0 0.0
  %1261 = vmatprep.subr.mxu0 0.0
  %1262 = vmatpush1.msra.mxu0 0.0
  %1263 = vmatprep.subr.mxu0 0.0
  %1264 = vmatpush1.msra.mxu0 0.0
  %1265 = vmatprep.subr.mxu0 0.0
  %1266 = vmatpush1.msra.mxu0 0.0
  %1267 = vmatprep.subr.mxu0 0.0
  %1268 = vmatpush1.msra.mxu0 0.0
  %1269 = vmatprep.subr.mxu0 0.0
  %1270 = vmatpush1.msra.mxu0 0.0
  %1271 = vmatprep.subr.mxu0 0.0
  %1272 = vmatpush1.msra.mxu0 0.0
  %1273 = vmatprep.subr.mxu0 0.0
  %1274 = vmatpush1.msra.mxu0 0.0
  %1275 = vmatprep.subr.mxu0 0.0
  %1276 = vmatpush1.msra.mxu0 0.0
  %1277 = vmatprep.subr.mxu0 0.0
  %1278 = vmatpush1.msra.mxu0 0.0
  %1279 = vmatprep.subr.mxu0 0.0
  %1280 = vmatpush1.msra.mxu0 0.0
  %1281 = vmatprep.subr.mxu0 0.0
  %1282 = vmatpush1.msra.mxu0 0.0
  %1283 = vmatprep.subr.mxu0 0.0
  %1284 = vmatpush1.msra.mxu0 0.0
  %1285 = vmatprep.subr.mxu0 0.0
  %1286 = vmatpush1.msra.mxu0 0.0
  %1287 = vmatprep.subr.mxu0 0.0
  %1288 = vmatpush1.msra.mxu0 0.0
  %1289 = vmatprep.subr.mxu0 0.0
  %1290 = vmatpush1.msra.mxu0 0.0
  %1291 = vmatprep.subr.mxu0 0.0
  %1292 = vmatpush1.msra.mxu0 0.0
  %1293 = vmatprep.subr.mxu0 0.0
  %1294 = vmatpush1.msra.mxu0 0.0
  %1295 = vmatprep.subr.mxu0 0.0
  %1296 = vmatpush1.msra.mxu0 0.0
  %1297 = vmatprep.subr.mxu0 0.0
  %1298 = vmatpush1.msra.mxu0 0.0
  %1299 = vmatprep.subr.mxu0 0.0
  %1300 = vmatpush1.msra.mxu0 0.0
  %1301 = vmatprep.subr.mxu0 0.0
  %1302 = vmatpush1.msra.mxu0 0.0
  %1303 = vmatprep.subr.mxu0 0.0
  %1304 = vmatpush1.msra.mxu0 0.0
  %1305 = vmatprep.subr.mxu0 0.0
  %1306 = vmatpush1.msra.mxu0 0.0
  %1307 = vmatprep.subr.mxu0 0.0
  %1308 = vmatpush1.msra.mxu0 0.0
  %1309 = vmatprep.subr.mxu0 0.0
  %1310 = vmatpush1.msra.mxu0 0.0
  %1311 = vmatprep.subr.mxu0 0.0
  %1312 = vmatpush1.msra.mxu0 0.0
  %1313 = vmatprep.mubr.f32.mxu0 0.0
  %1314 = vmatmul.mubr.f32.gmra.mrb[0].mxu0 %v58
  %v1315 = vpop.f32.mrb[0].mxu0
  %v1316 = vadd.f32 0.0, %v1315
  %v1317 = vpop.f32.mrb[0].mxu0
  %1318 = vdwg.mxu0
  %1319 = vst [vmem:[%s7] sm:$0xff] %v1316
  // Predicated region
  $region30: #{forward_model.1} parent=0 // pred_check
    _
  $region31: #{forward_model.1} parent=0 // pred_check_branch
    %1321 = sbr.rel (0) target = $region33
  $region32: #{forward_model.1} parent=0 // pred_region
    _
  $region33: #{forward_model.1} parent=0 // pred_fallthru
    _
  // Predicated region
  $region34: #{forward_model.1} parent=0 // pred_check
    _
  $region35: #{forward_model.1} parent=0 // pred_check_branch
    %1323 = sbr.rel (0) target = $region37
  $region36: #{forward_model.1} parent=0 // pred_region
    _
  $region37: #{forward_model.1} parent=0 // pred_fallthru
    _

</llo_original>
